<compile_context>
chip_gen: v6e
topology: v6e:2x2x1
jax: 0.10.0
libtpu: 0.0.40
codegen_flags: <defaults>
</compile_context>

<pallas_src>
import functools
import math

import jax
import jax.numpy as jnp
from jax.experimental import pallas as pl
from jax.experimental.pallas import tpu as pltpu


def _round_up(n, m):
    return ((n + m - 1) // m) * m


# -----------------------------------------------------------------------------
# Single-tile kernel: whole batch in one grid step, no scratch, no pl.when.
# a_ref holds [x|z] stacked on top of [x|z_hat]  ->  shape (2B, din).
# -----------------------------------------------------------------------------
def _mine_single_tile_kernel(a_ref, w1_ref, b1_ref, w2_ref, b2_ref, w3_ref,
                             b3_ref, out_ref, *, batch_size, log_batch):
    a = a_ref[...]                                              # (2B, din)

    # Fused MLP on the stacked (joint ; marginal) rows -- one MXU matmul per layer.
    h1 = jnp.maximum(
        jnp.dot(a, w1_ref[...], preferred_element_type=jnp.float32) + b1_ref[...], 0.0)
    h2 = jnp.maximum(
        jnp.dot(h1, w2_ref[...], preferred_element_type=jnp.float32) + b2_ref[...], 0.0)

    # Output layer (H -> 1) on the VPU: multiply + lane reduce, no MXU.
    e = jnp.sum(h2 * w3_ref[...], axis=-1, keepdims=True) + b3_ref[...]   # (2B, 1)

    # Split joint / marginal halves with a mask (no sublane slicing needed).
    row = jax.lax.broadcasted_iota(jnp.int32, e.shape, 0)       # (2B, 1)
    is_joint = row < batch_size

    # primer_termino = mean over the joint half.
    first = jnp.sum(jnp.where(is_joint, e, 0.0), axis=0, keepdims=True) / batch_size

    # segundo_termino = logsumexp over the marginal half - log(B).
    e_hat = jnp.where(is_joint, -jnp.inf, e)
    m = jnp.max(e_hat, axis=0, keepdims=True)
    lse = m + jnp.log(jnp.sum(jnp.exp(e_hat - m), axis=0, keepdims=True))
    second = lse - log_batch

    out_ref[...] = -(first - second)


# -----------------------------------------------------------------------------
# Streaming kernel (large B): batch-tiled grid with online logsumexp.
# a_ref holds [x|z | x|z_hat] packed along lanes  ->  shape (tb, 2*din).
# -----------------------------------------------------------------------------
def _mine_stream_kernel(a_ref, w1_ref, b1_ref, w2_ref, b2_ref, w3_ref, b3_ref,
                        out_ref, sum_acc, m_acc, s_acc,
                        *, batch_size, tile_rows, din, log_batch, needs_mask):
    i = pl.program_id(0)

    @pl.when(i == 0)
    def _():
        sum_acc[...] = jnp.zeros_like(sum_acc)                  # running sum of e (joint)
        m_acc[...] = jnp.full_like(m_acc, -jnp.inf)             # running max (marginal)
        s_acc[...] = jnp.zeros_like(s_acc)                      # running sum-exp (marginal)

    a = a_ref[...]                                              # (tb, 2*din)
    a_joint = a[:, :din]                                        # [x|z]
    a_marg = a[:, din:]                                         # [x|z_hat]
    a2 = jnp.concatenate([a_joint, a_marg], axis=0)             # (2*tb, din)

    h1 = jnp.maximum(
        jnp.dot(a2, w1_ref[...], preferred_element_type=jnp.float32) + b1_ref[...], 0.0)
    h2 = jnp.maximum(
        jnp.dot(h1, w2_ref[...], preferred_element_type=jnp.float32) + b2_ref[...], 0.0)
    e = jnp.sum(h2 * w3_ref[...], axis=-1, keepdims=True) + b3_ref[...]   # (2*tb, 1)

    row2 = jax.lax.broadcasted_iota(jnp.int32, e.shape, 0)      # (2*tb, 1)
    is_joint = row2 < tile_rows
    if needs_mask:
        row_in_tile = jnp.where(is_joint, row2, row2 - tile_rows)
        valid = i * tile_rows + row_in_tile < batch_size
        joint_mask = jnp.logical_and(is_joint, valid)
        marg_mask = jnp.logical_and(jnp.logical_not(is_joint), valid)
    else:
        joint_mask = is_joint
        marg_mask = jnp.logical_not(is_joint)

    # Joint branch: running sum of per-sample scores.
    sum_acc[...] += jnp.sum(jnp.where(joint_mask, e, 0.0), axis=0, keepdims=True)

    # Marginal branch: online (streaming) logsumexp.
    e_hat = jnp.where(marg_mask, e, -jnp.inf)
    m_tile = jnp.max(e_hat, axis=0, keepdims=True)
    m_new = jnp.maximum(m_acc[...], m_tile)
    s_acc[...] = s_acc[...] * jnp.exp(m_acc[...] - m_new) + \
        jnp.sum(jnp.exp(e_hat - m_new), axis=0, keepdims=True)
    m_acc[...] = m_new

    @pl.when(i == pl.num_programs(0) - 1)
    def _():
        first = sum_acc[...] / batch_size
        second = m_acc[...] + jnp.log(s_acc[...]) - log_batch
        out_ref[...] = -(first - second)


# -----------------------------------------------------------------------------
# Wrapper
# -----------------------------------------------------------------------------
def mine_forward(x, z, params, perm_key, *, tile_rows=512, max_single_tile_batch=2048):
    """-( mean(T(x,z)) - (logsumexp(T(x, z[perm])) - log B) ) via Pallas."""
    B, dx = x.shape
    dz = z.shape[1]
    din = dx + dz

    # torch.randperm(batch_size) equivalent (shuffle + packing stay in plain JAX).
    # TODO(synk): the permutation gather could be folded into the kernel via
    # scalar-prefetch + in-kernel gather to remove the wrapper-side XLA gather.
    perm = jax.random.permutation(perm_key, B)
    z_hat = jnp.take(z, perm, axis=0)

    x = x.astype(jnp.float32)
    z = z.astype(jnp.float32)
    z_hat = z_hat.astype(jnp.float32)

    w1, b1, w2, b2, w3, b3 = params
    H = w1.shape[1]
    w1 = w1.astype(jnp.float32)
    b1 = b1.reshape(1, H).astype(jnp.float32)
    w2 = w2.astype(jnp.float32)
    b2 = b2.reshape(1, H).astype(jnp.float32)
    w3_row = w3.reshape(1, H).astype(jnp.float32)   # used by VPU lane-reduce, not MXU
    b3 = b3.reshape(1, 1).astype(jnp.float32)

    xz = jnp.concatenate([x, z], axis=1)            # (B, din)
    xzh = jnp.concatenate([x, z_hat], axis=1)       # (B, din)

    invariant = lambda i: (0, 0)                    # weights: DMA'd once, VMEM resident
    weight_specs = [
        pl.BlockSpec((din, H), invariant),          # W1 (kept whole)
        pl.BlockSpec((1, H), invariant),            # b1
        pl.BlockSpec((H, H), invariant),            # W2
        pl.BlockSpec((1, H), invariant),            # b2
        pl.BlockSpec((1, H), invariant),            # w3 (row)
        pl.BlockSpec((1, 1), invariant),            # b3
    ]
    weights = (w1, b1, w2, b2, w3_row, b3)

    if B <= max_single_tile_batch:
        # ---- single-tile fast path: whole batch in one grid step ------------
        a = jnp.concatenate([xz, xzh], axis=0)      # (2B, din): joint rows then marginal
        kernel = functools.partial(
            _mine_single_tile_kernel, batch_size=B, log_batch=math.log(B))
        out = pl.pallas_call(
            kernel,
            out_shape=jax.ShapeDtypeStruct((1, 1), jnp.float32),
            grid_spec=pltpu.PrefetchScalarGridSpec(
                num_scalar_prefetch=0,
                grid=(1,),
                in_specs=[pl.BlockSpec((2 * B, din), lambda i: (0, 0))] + weight_specs,
                out_specs=pl.BlockSpec((1, 1), lambda i: (0, 0)),
            ),
            compiler_params=pltpu.CompilerParams(
                dimension_semantics=("arbitrary",)),
        )(a, *weights)
        return out.reshape(1)

    # ---- streaming path: batch-tiled grid with online logsumexp -------------
    tb = min(tile_rows, _round_up(B, 8))
    tb = _round_up(tb, 8)
    n_tiles = -(-B // tb)
    b_pad = n_tiles * tb

    # One lane-dense packed stream per tile: [x | z | x | z_hat]  (B, 2*din).
    a = jnp.concatenate([xz, xzh], axis=1)
    if b_pad != B:
        a = jnp.pad(a, ((0, b_pad - B), (0, 0)))

    kernel = functools.partial(
        _mine_stream_kernel,
        batch_size=B, tile_rows=tb, din=din,
        log_batch=math.log(B), needs_mask=(b_pad != B))

    out = pl.pallas_call(
        kernel,
        out_shape=jax.ShapeDtypeStruct((1, 1), jnp.float32),
        grid_spec=pltpu.PrefetchScalarGridSpec(
            num_scalar_prefetch=0,
            grid=(n_tiles,),
            in_specs=[pl.BlockSpec((tb, 2 * din), lambda i: (i, 0))] + weight_specs,
            out_specs=pl.BlockSpec((1, 1), lambda i: (0, 0)),
            scratch_shapes=[
                pltpu.VMEM((1, 1), jnp.float32),    # running sum of e (joint)
                pltpu.VMEM((1, 1), jnp.float32),    # running max (marginal)
                pltpu.VMEM((1, 1), jnp.float32),    # running sum-exp (marginal)
            ],
        ),
        compiler_params=pltpu.CompilerParams(
            dimension_semantics=("arbitrary",)),    # batch axis carries accumulators
    )(a, *weights)
    return out.reshape(1)


def init_params(key, din, hidden):
    """Deterministic MLP parameters for the statistics network T."""
    k1, k2, k3 = jax.random.split(key, 3)
    scale1 = 1.0 / math.sqrt(din)
    scale2 = 1.0 / math.sqrt(hidden)
    w1 = jax.random.uniform(k1, (din, hidden), jnp.float32, -scale1, scale1)
    b1 = jnp.zeros((1, hidden), jnp.float32)
    w2 = jax.random.uniform(k2, (hidden, hidden), jnp.float32, -scale2, scale2)
    b2 = jnp.zeros((1, hidden), jnp.float32)
    w3 = jax.random.uniform(k3, (hidden, 1), jnp.float32, -scale2, scale2)
    b3 = jnp.zeros((1, 1), jnp.float32)
    return (w1, b1, w2, b2, w3, b3)


def _reference(x, z, z_hat, params):
    """Pure-JAX reference of the same computation."""
    w1, b1, w2, b2, w3, b3 = params

    def T(a):
        h1 = jnp.maximum(a @ w1 + b1, 0.0)
        h2 = jnp.maximum(h1 @ w2 + b2, 0.0)
        return h2 @ w3 + b3

    e = T(jnp.concatenate([x, z], axis=1))
    e_hat = T(jnp.concatenate([x, z_hat], axis=1))
    return -(jnp.mean(e)
             - (jax.scipy.special.logsumexp(e_hat, axis=0) - jnp.log(x.shape[0])))


if __name__ == "__main__":
    DX, DZ, H = 4, 4, 32

    root = jax.random.PRNGKey(0)
    kx, kz, kp, kperm = jax.random.split(root, 4)
    params = init_params(kp, DX + DZ, H)

    # ---- Test 1: single-tile fast path --------------------------------------
    B = 256
    x = jax.random.normal(kx, (B, DX), jnp.float32)
    z = jax.random.normal(kz, (B, DZ), jnp.float32)

    loss = mine_forward(x, z, params, kperm)
    jax.block_until_ready(loss)

    perm = jax.random.permutation(kperm, B)
    ref = _reference(x, z, z[perm], params)
    assert jnp.allclose(loss, ref, atol=1e-4, rtol=1e-4), (loss, ref)

    # ---- Test 2: streaming path (forced), non-multiple B exercises masking --
    B2 = 250
    x2, z2 = x[:B2], z[:B2]
    loss2 = mine_forward(x2, z2, params, kperm, tile_rows=64, max_single_tile_batch=0)
    jax.block_until_ready(loss2)

    perm2 = jax.random.permutation(kperm, B2)
    ref2 = _reference(x2, z2, z2[perm2], params)
    assert jnp.allclose(loss2, ref2, atol=1e-4, rtol=1e-4), (loss2, ref2)

    print("KERNEL_OK")
</pallas_src>

<mosaic_0001>
module attributes {stable_mosaic.version = 11 : i64} {
  func.func @_mine_single_tile_kernel(%arg0: i32, %arg1: memref<512x8xf32, #tpu.memory_space<vmem>>, %arg2: memref<8x32xf32, #tpu.memory_space<vmem>>, %arg3: memref<1x32xf32, #tpu.memory_space<vmem>>, %arg4: memref<32x32xf32, #tpu.memory_space<vmem>>, %arg5: memref<1x32xf32, #tpu.memory_space<vmem>>, %arg6: memref<1x32xf32, #tpu.memory_space<vmem>>, %arg7: memref<1x1xf32, #tpu.memory_space<vmem>>, %arg8: memref<1x1xf32, #tpu.memory_space<vmem>>) attributes {dimension_semantics = [#tpu.dimension_semantics<arbitrary>], iteration_bounds = array<i64: 1>, scalar_prefetch = 0 : i64, scratch_operands = 0 : i64, tpu.core_type = #tpu.core_type<tc>, window_params = [{pipeline_mode = #tpu.pipeline_mode<synchronous>, transform_indices = @transform_0, window_bounds = array<i64: 512, 8>}, {pipeline_mode = #tpu.pipeline_mode<synchronous>, transform_indices = @transform_1, window_bounds = array<i64: 8, 32>}, {pipeline_mode = #tpu.pipeline_mode<synchronous>, transform_indices = @transform_2, window_bounds = array<i64: 1, 32>}, {pipeline_mode = #tpu.pipeline_mode<synchronous>, transform_indices = @transform_3, window_bounds = array<i64: 32, 32>}, {pipeline_mode = #tpu.pipeline_mode<synchronous>, transform_indices = @transform_4, window_bounds = array<i64: 1, 32>}, {pipeline_mode = #tpu.pipeline_mode<synchronous>, transform_indices = @transform_5, window_bounds = array<i64: 1, 32>}, {pipeline_mode = #tpu.pipeline_mode<synchronous>, transform_indices = @transform_6, window_bounds = array<i64: 1, 1>}, {pipeline_mode = #tpu.pipeline_mode<synchronous>, transform_indices = @transform_7, window_bounds = array<i64: 1, 1>}]} {
    %c0 = arith.constant 0 : index
    %c0_0 = arith.constant 0 : index
    %0 = vector.load %arg1[%c0, %c0_0] : memref<512x8xf32, #tpu.memory_space<vmem>>, vector<512x8xf32>
    %c0_1 = arith.constant 0 : index
    %c0_2 = arith.constant 0 : index
    %1 = vector.load %arg2[%c0_1, %c0_2] : memref<8x32xf32, #tpu.memory_space<vmem>>, vector<8x32xf32>
    %cst = arith.constant dense<0.000000e+00> : vector<512x32xf32>
    %2 = tpu.matmul %0, %1, %cst {dimension_numbers = #tpu.dot_dimension_numbers<[1], [0], [0], [1], [0, 0, 1, 1], [], []>} : vector<512x8xf32>, vector<8x32xf32>, vector<512x32xf32> -> vector<512x32xf32>
    %c0_3 = arith.constant 0 : index
    %c0_4 = arith.constant 0 : index
    %3 = vector.load %arg3[%c0_3, %c0_4] : memref<1x32xf32, #tpu.memory_space<vmem>>, vector<1x32xf32>
    %4 = vector.broadcast %3 : vector<1x32xf32> to vector<512x32xf32>
    %5 = arith.addf %2, %4 : vector<512x32xf32>
    %cst_5 = arith.constant 0.000000e+00 : f32
    %6 = vector.broadcast %cst_5 : f32 to vector<512x32xf32>
    %7 = arith.maximumf %5, %6 : vector<512x32xf32>
    %c0_6 = arith.constant 0 : index
    %c0_7 = arith.constant 0 : index
    %8 = vector.load %arg4[%c0_6, %c0_7] : memref<32x32xf32, #tpu.memory_space<vmem>>, vector<32x32xf32>
    %cst_8 = arith.constant dense<0.000000e+00> : vector<512x32xf32>
    %9 = tpu.matmul %7, %8, %cst_8 {dimension_numbers = #tpu.dot_dimension_numbers<[1], [0], [0], [1], [0, 0, 1, 1], [], []>} : vector<512x32xf32>, vector<32x32xf32>, vector<512x32xf32> -> vector<512x32xf32>
    %c0_9 = arith.constant 0 : index
    %c0_10 = arith.constant 0 : index
    %10 = vector.load %arg5[%c0_9, %c0_10] : memref<1x32xf32, #tpu.memory_space<vmem>>, vector<1x32xf32>
    %11 = vector.broadcast %10 : vector<1x32xf32> to vector<512x32xf32>
    %12 = arith.addf %9, %11 : vector<512x32xf32>
    %cst_11 = arith.constant 0.000000e+00 : f32
    %13 = vector.broadcast %cst_11 : f32 to vector<512x32xf32>
    %14 = arith.maximumf %12, %13 : vector<512x32xf32>
    %c0_12 = arith.constant 0 : index
    %c0_13 = arith.constant 0 : index
    %15 = vector.load %arg6[%c0_12, %c0_13] : memref<1x32xf32, #tpu.memory_space<vmem>>, vector<1x32xf32>
    %16 = vector.broadcast %15 : vector<1x32xf32> to vector<512x32xf32>
    %17 = arith.mulf %14, %16 : vector<512x32xf32>
    %cst_14 = arith.constant dense<0.000000e+00> : vector<512xf32>
    %18 = vector.multi_reduction <add>, %17, %cst_14 [1] : vector<512x32xf32> to vector<512xf32>
    %19 = vector.shape_cast %18 : vector<512xf32> to vector<512x1xf32>
    %c0_15 = arith.constant 0 : index
    %c0_16 = arith.constant 0 : index
    %20 = vector.load %arg7[%c0_15, %c0_16] : memref<1x1xf32, #tpu.memory_space<vmem>>, vector<1x1xf32>
    %21 = vector.broadcast %20 : vector<1x1xf32> to vector<512x1xf32>
    %22 = arith.addf %19, %21 : vector<512x1xf32>
    %23 = tpu.iota {dimensions = array<i32: 0>} : vector<512x1xi32>
    %c256_i32 = arith.constant 256 : i32
    %24 = vector.broadcast %c256_i32 : i32 to vector<512x1xi32>
    %25 = arith.cmpi slt, %23, %24 : vector<512x1xi32>
    %cst_17 = arith.constant 0.000000e+00 : f32
    %26 = vector.broadcast %cst_17 : f32 to vector<512x1xf32>
    %27 = arith.select %25, %22, %26 : vector<512x1xi1>, vector<512x1xf32>
    %cst_18 = arith.constant dense<0.000000e+00> : vector<1xf32>
    %28 = vector.multi_reduction <add>, %27, %cst_18 [0] : vector<512x1xf32> to vector<1xf32>
    %29 = vector.shape_cast %28 : vector<1xf32> to vector<1x1xf32>
    %cst_19 = arith.constant 2.560000e+02 : f32
    %30 = vector.broadcast %cst_19 : f32 to vector<1x1xf32>
    %31 = arith.divf %29, %30 : vector<1x1xf32>
    %cst_20 = arith.constant 0xFF800000 : f32
    %32 = vector.broadcast %cst_20 : f32 to vector<512x1xf32>
    %33 = arith.select %25, %32, %22 : vector<512x1xi1>, vector<512x1xf32>
    %cst_21 = arith.constant dense<0xFF800000> : vector<1xf32>
    %34 = vector.multi_reduction <maximumf>, %33, %cst_21 [0] : vector<512x1xf32> to vector<1xf32>
    %35 = vector.shape_cast %34 : vector<1xf32> to vector<1x1xf32>
    %36 = vector.broadcast %35 : vector<1x1xf32> to vector<512x1xf32>
    %37 = arith.subf %33, %36 : vector<512x1xf32>
    %38 = math.exp %37 : vector<512x1xf32>
    %cst_22 = arith.constant dense<0.000000e+00> : vector<1xf32>
    %39 = vector.multi_reduction <add>, %38, %cst_22 [0] : vector<512x1xf32> to vector<1xf32>
    %40 = vector.shape_cast %39 : vector<1xf32> to vector<1x1xf32>
    %41 = math.log %40 : vector<1x1xf32>
    %42 = arith.addf %35, %41 : vector<1x1xf32>
    %cst_23 = arith.constant 5.54517746 : f32
    %43 = vector.broadcast %cst_23 : f32 to vector<1x1xf32>
    %44 = arith.subf %42, %43 : vector<1x1xf32>
    %45 = arith.subf %31, %44 : vector<1x1xf32>
    %cst_24 = arith.constant 0.000000e+00 : f32
    %46 = vector.broadcast %cst_24 : f32 to vector<1x1xf32>
    %47 = arith.subf %46, %45 : vector<1x1xf32>
    %c0_25 = arith.constant 0 : index
    %c0_26 = arith.constant 0 : index
    %48 = vector.load %arg8[%c0_25, %c0_26] : memref<1x1xf32, #tpu.memory_space<vmem>>, vector<1x1xf32>
    tpu.vector_store %arg8[%c0_25, %c0_26], %47 {strides = array<i32>} : memref<1x1xf32, #tpu.memory_space<vmem>>, vector<1x1xf32>,
    return
  }
  func.func @transform_0(%arg0: i32) -> (i32, i32) {
    %c0_i32 = arith.constant 0 : i32
    %c0_i32_0 = arith.constant 0 : i32
    %c0_i32_1 = arith.constant 0 : i32
    return %c0_i32, %c0_i32_0 : i32, i32
  }
  func.func @transform_1(%arg0: i32) -> (i32, i32) {
    %c0_i32 = arith.constant 0 : i32
    %c0_i32_0 = arith.constant 0 : i32
    %c0_i32_1 = arith.constant 0 : i32
    return %c0_i32, %c0_i32_0 : i32, i32
  }
  func.func @transform_2(%arg0: i32) -> (i32, i32) {
    %c0_i32 = arith.constant 0 : i32
    %c0_i32_0 = arith.constant 0 : i32
    %c0_i32_1 = arith.constant 0 : i32
    return %c0_i32, %c0_i32_0 : i32, i32
  }
  func.func @transform_3(%arg0: i32) -> (i32, i32) {
    %c0_i32 = arith.constant 0 : i32
    %c0_i32_0 = arith.constant 0 : i32
    %c0_i32_1 = arith.constant 0 : i32
    return %c0_i32, %c0_i32_0 : i32, i32
  }
  func.func @transform_4(%arg0: i32) -> (i32, i32) {
    %c0_i32 = arith.constant 0 : i32
    %c0_i32_0 = arith.constant 0 : i32
    %c0_i32_1 = arith.constant 0 : i32
    return %c0_i32, %c0_i32_0 : i32, i32
  }
  func.func @transform_5(%arg0: i32) -> (i32, i32) {
    %c0_i32 = arith.constant 0 : i32
    %c0_i32_0 = arith.constant 0 : i32
    %c0_i32_1 = arith.constant 0 : i32
    return %c0_i32, %c0_i32_0 : i32, i32
  }
  func.func @transform_6(%arg0: i32) -> (i32, i32) {
    %c0_i32 = arith.constant 0 : i32
    %c0_i32_0 = arith.constant 0 : i32
    %c0_i32_1 = arith.constant 0 : i32
    return %c0_i32, %c0_i32_0 : i32, i32
  }
  func.func @transform_7(%arg0: i32) -> (i32, i32) {
    %c0_i32 = arith.constant 0 : i32
    %c0_i32_0 = arith.constant 0 : i32
    %c0_i32_1 = arith.constant 0 : i32
    return %c0_i32, %c0_i32_0 : i32, i32
  }
}

</mosaic_0001>

<llo_original>
// kernel: tpu_custom_call.1
$region0: #{tpu_custom_call.1}
  #allocation0 [shape = 'u32[]', space=smem, size = 0x4, offset = 0x4, fixed_abs, tag = 'smem constant byte address 0x4 - core index']
  #allocation1 [shape = 'u32[144,128]{1,0:T(1,128)}', space=vmem, size = 0x12000, scoped, tag = 'internal scratch']
  #allocation2 [shape = 'f32[1,1]{1,0:T(1,128)S(1)}', space=vmem, size = 0x200, scoped, tag = 'scoped memory for tpu_custom_call.1']
  %s0 = inlined_call_operand.vmem [shape: f32[512,8], index: 0, kind: input, shape index: {}]
  %s1 = inlined_call_operand.vmem [shape: f32[8,32], index: 1, kind: input, shape index: {}]
  %s2 = inlined_call_operand.vmem [shape: f32[1,32], index: 2, kind: input, shape index: {}]
  %s3 = inlined_call_operand.vmem [shape: f32[32,32], index: 3, kind: input, shape index: {}]
  %s4 = inlined_call_operand.vmem [shape: f32[1,32], index: 4, kind: input, shape index: {}]
  %s5 = inlined_call_operand.vmem [shape: f32[1,32], index: 5, kind: input, shape index: {}]
  %s6 = inlined_call_operand.<no memory space> [shape: f32[1,1], index: 6, kind: input, shape index: {}]
  %s7 = inlined_call_operand.hbm [shape: f32[1,1], index: 7, kind: output, shape index: {}]
  %s8 = sld [smem:[#allocation0]]
  $region38: #{tpu_custom_call.1} parent=0
    _
  %s10 = ssub.s32 1, %s8
  %s11 = scalar_select 0, %s10, %s8
  %v12 = vstv %s6
  %13 = vst [vmem:[#allocation2] sm:$0x1] %v12
  $region1: #{tpu_custom_call.1} parent=0
    #allocation3 [shape = 'u8[512]{0}', space=vmem, size = 0x400, scoped, tag = 'output window, operand 0, single buffered']
    #allocation4 [shape = 's32[1]{0}', space=sflag, size = 0x4, scoped, tag = 'scoped memory for tpu_custom_call.1']
    %14 = vsyncpa [#allocation4], 0
    // Predicated region
    $region2: #{tpu_custom_call.1} parent=1 // pred_check
      _
    $region3: #{tpu_custom_call.1} parent=1 // pred_check_branch
      %16 = sbr.rel (0) target = $region5
    $region4: #{tpu_custom_call.1} parent=1 // pred_region
      _
    $region5: #{tpu_custom_call.1} parent=1 // pred_fallthru
      _
    // Predicated region
    $region6: #{tpu_custom_call.1} parent=1 // pred_check
      _
    $region7: #{tpu_custom_call.1} parent=1 // pred_check_branch
      %18 = sbr.rel (0) target = $region9
    $region8: #{tpu_custom_call.1} parent=1 // pred_region
      _
    $region9: #{tpu_custom_call.1} parent=1 // pred_fallthru
      _
    // Predicated region
    $region10: #{tpu_custom_call.1} parent=1 // pred_check
      _
    $region11: #{tpu_custom_call.1} parent=1 // pred_check_branch
      %20 = sbr.rel (0) target = $region13
    $region12: #{tpu_custom_call.1} parent=1 // pred_region
      _
    $region13: #{tpu_custom_call.1} parent=1 // pred_fallthru
      _
    // Predicated region
    $region14: #{tpu_custom_call.1} parent=1 // pred_check
      _
    $region15: #{tpu_custom_call.1} parent=1 // pred_check_branch
      %22 = sbr.rel (0) target = $region17
    $region16: #{tpu_custom_call.1} parent=1 // pred_region
      _
    $region17: #{tpu_custom_call.1} parent=1 // pred_fallthru
      _
    // Predicated region
    $region18: #{tpu_custom_call.1} parent=1 // pred_check
      _
    $region19: #{tpu_custom_call.1} parent=1 // pred_check_branch
      %24 = sbr.rel (0) target = $region21
    $region20: #{tpu_custom_call.1} parent=1 // pred_region
      _
    $region21: #{tpu_custom_call.1} parent=1 // pred_fallthru
      _
    // Predicated region
    $region22: #{tpu_custom_call.1} parent=1 // pred_check
      _
    $region23: #{tpu_custom_call.1} parent=1 // pred_check_branch
      %26 = sbr.rel (0) target = $region25
    $region24: #{tpu_custom_call.1} parent=1 // pred_region
      _
    $region25: #{tpu_custom_call.1} parent=1 // pred_fallthru
      _
    // Predicated region
    $region26: #{tpu_custom_call.1} parent=1 // pred_check
      _
    $region27: #{tpu_custom_call.1} parent=1 // pred_check_branch
      %28 = sbr.rel (0) target = $region29
    $region28: #{tpu_custom_call.1} parent=1 // pred_region
      _
    $region29: #{tpu_custom_call.1} parent=1 // pred_fallthru
      _
    %v29 = vld [vmem:[%s0] sm:$0xff]
    %v30 = vld [vmem:[%s0 + $0x8] sm:$0xff]
    %v31 = vld [vmem:[%s0 + $0x10] sm:$0xff]
    %v32 = vld [vmem:[%s0 + $0x18] sm:$0xff]
    %v33 = vld [vmem:[%s0 + $0x20] sm:$0xff]
    %v34 = vld [vmem:[%s0 + $0x28] sm:$0xff]
    %v35 = vld [vmem:[%s0 + $0x30] sm:$0xff]
    %v36 = vld [vmem:[%s0 + $0x38] sm:$0xff]
    %v37 = vld [vmem:[%s0 + $0x40] sm:$0xff]
    %v38 = vld [vmem:[%s0 + $0x48] sm:$0xff]
    %v39 = vld [vmem:[%s0 + $0x50] sm:$0xff]
    %v40 = vld [vmem:[%s0 + $0x58] sm:$0xff]
    %v41 = vld [vmem:[%s0 + $0x60] sm:$0xff]
    %v42 = vld [vmem:[%s0 + $0x68] sm:$0xff]
    %v43 = vld [vmem:[%s0 + $0x70] sm:$0xff]
    %v44 = vld [vmem:[%s0 + $0x78] sm:$0xff]
    %v45 = vld [vmem:[%s0 + $0x80] sm:$0xff]
    %v46 = vld [vmem:[%s0 + $0x88] sm:$0xff]
    %v47 = vld [vmem:[%s0 + $0x90] sm:$0xff]
    %v48 = vld [vmem:[%s0 + $0x98] sm:$0xff]
    %v49 = vld [vmem:[%s0 + $0xa0] sm:$0xff]
    %v50 = vld [vmem:[%s0 + $0xa8] sm:$0xff]
    %v51 = vld [vmem:[%s0 + $0xb0] sm:$0xff]
    %v52 = vld [vmem:[%s0 + $0xb8] sm:$0xff]
    %v53 = vld [vmem:[%s0 + $0xc0] sm:$0xff]
    %v54 = vld [vmem:[%s0 + $0xc8] sm:$0xff]
    %v55 = vld [vmem:[%s0 + $0xd0] sm:$0xff]
    %v56 = vld [vmem:[%s0 + $0xd8] sm:$0xff]
    %v57 = vld [vmem:[%s0 + $0xe0] sm:$0xff]
    %v58 = vld [vmem:[%s0 + $0xe8] sm:$0xff]
    %v59 = vld [vmem:[%s0 + $0xf0] sm:$0xff]
    %v60 = vld [vmem:[%s0 + $0xf8] sm:$0xff]
    %v61 = vld [vmem:[%s0 + $0x100] sm:$0xff]
    %v62 = vld [vmem:[%s0 + $0x108] sm:$0xff]
    %v63 = vld [vmem:[%s0 + $0x110] sm:$0xff]
    %v64 = vld [vmem:[%s0 + $0x118] sm:$0xff]
    %v65 = vld [vmem:[%s0 + $0x120] sm:$0xff]
    %v66 = vld [vmem:[%s0 + $0x128] sm:$0xff]
    %v67 = vld [vmem:[%s0 + $0x130] sm:$0xff]
    %v68 = vld [vmem:[%s0 + $0x138] sm:$0xff]
    %v69 = vld [vmem:[%s0 + $0x140] sm:$0xff]
    %v70 = vld [vmem:[%s0 + $0x148] sm:$0xff]
    %v71 = vld [vmem:[%s0 + $0x150] sm:$0xff]
    %v72 = vld [vmem:[%s0 + $0x158] sm:$0xff]
    %v73 = vld [vmem:[%s0 + $0x160] sm:$0xff]
    %v74 = vld [vmem:[%s0 + $0x168] sm:$0xff]
    %v75 = vld [vmem:[%s0 + $0x170] sm:$0xff]
    %v76 = vld [vmem:[%s0 + $0x178] sm:$0xff]
    %v77 = vld [vmem:[%s0 + $0x180] sm:$0xff]
    %v78 = vld [vmem:[%s0 + $0x188] sm:$0xff]
    %v79 = vld [vmem:[%s0 + $0x190] sm:$0xff]
    %v80 = vld [vmem:[%s0 + $0x198] sm:$0xff]
    %v81 = vld [vmem:[%s0 + $0x1a0] sm:$0xff]
    %v82 = vld [vmem:[%s0 + $0x1a8] sm:$0xff]
    %v83 = vld [vmem:[%s0 + $0x1b0] sm:$0xff]
    %v84 = vld [vmem:[%s0 + $0x1b8] sm:$0xff]
    %v85 = vld [vmem:[%s0 + $0x1c0] sm:$0xff]
    %v86 = vld [vmem:[%s0 + $0x1c8] sm:$0xff]
    %v87 = vld [vmem:[%s0 + $0x1d0] sm:$0xff]
    %v88 = vld [vmem:[%s0 + $0x1d8] sm:$0xff]
    %v89 = vld [vmem:[%s0 + $0x1e0] sm:$0xff]
    %v90 = vld [vmem:[%s0 + $0x1e8] sm:$0xff]
    %v91 = vld [vmem:[%s0 + $0x1f0] sm:$0xff]
    %v92 = vld [vmem:[%s0 + $0x1f8] sm:$0xff]
    %v93 = vld [vmem:[%s1] sm:$0xff]
    %v94 = vld [vmem:[%s2] sm:$0x1]
    %v96 = vlaneseq
    %v97 = vshrl.u32 %v96, 7
    %v98 = vsub.s32 0, %v97
    %v99 = vrot.slane %v94, %v98
    %vm101 = vcmask 64512
    %v103 = vsel %vm101, %v29, 0
    %v106 = vsel %vm101, %v30, 0
    %v109 = vsel %vm101, %v31, 0
    %v112 = vsel %vm101, %v32, 0
    %v115 = vsel %vm101, %v33, 0
    %v118 = vsel %vm101, %v34, 0
    %v121 = vsel %vm101, %v35, 0
    %v124 = vsel %vm101, %v36, 0
    %v127 = vsel %vm101, %v37, 0
    %v130 = vsel %vm101, %v38, 0
    %v133 = vsel %vm101, %v39, 0
    %v136 = vsel %vm101, %v40, 0
    %v139 = vsel %vm101, %v41, 0
    %v142 = vsel %vm101, %v42, 0
    %v145 = vsel %vm101, %v43, 0
    %v148 = vsel %vm101, %v44, 0
    %v151 = vsel %vm101, %v45, 0
    %v154 = vsel %vm101, %v46, 0
    %v157 = vsel %vm101, %v47, 0
    %v160 = vsel %vm101, %v48, 0
    %v163 = vsel %vm101, %v49, 0
    %v166 = vsel %vm101, %v50, 0
    %v169 = vsel %vm101, %v51, 0
    %v172 = vsel %vm101, %v52, 0
    %v175 = vsel %vm101, %v53, 0
    %v178 = vsel %vm101, %v54, 0
    %v181 = vsel %vm101, %v55, 0
    %v184 = vsel %vm101, %v56, 0
    %v187 = vsel %vm101, %v57, 0
    %v190 = vsel %vm101, %v58, 0
    %v193 = vsel %vm101, %v59, 0
    %v196 = vsel %vm101, %v60, 0
    %v199 = vsel %vm101, %v61, 0
    %v202 = vsel %vm101, %v62, 0
    %v205 = vsel %vm101, %v63, 0
    %v208 = vsel %vm101, %v64, 0
    %v211 = vsel %vm101, %v65, 0
    %v214 = vsel %vm101, %v66, 0
    %v217 = vsel %vm101, %v67, 0
    %v220 = vsel %vm101, %v68, 0
    %v223 = vsel %vm101, %v69, 0
    %v226 = vsel %vm101, %v70, 0
    %v229 = vsel %vm101, %v71, 0
    %v232 = vsel %vm101, %v72, 0
    %v235 = vsel %vm101, %v73, 0
    %v238 = vsel %vm101, %v74, 0
    %v241 = vsel %vm101, %v75, 0
    %v244 = vsel %vm101, %v76, 0
    %v247 = vsel %vm101, %v77, 0
    %v250 = vsel %vm101, %v78, 0
    %v253 = vsel %vm101, %v79, 0
    %v256 = vsel %vm101, %v80, 0
    %v259 = vsel %vm101, %v81, 0
    %v262 = vsel %vm101, %v82, 0
    %v265 = vsel %vm101, %v83, 0
    %v268 = vsel %vm101, %v84, 0
    %v271 = vsel %vm101, %v85, 0
    %v274 = vsel %vm101, %v86, 0
    %v277 = vsel %vm101, %v87, 0
    %v280 = vsel %vm101, %v88, 0
    %v283 = vsel %vm101, %v89, 0
    %v286 = vsel %vm101, %v90, 0
    %v289 = vsel %vm101, %v91, 0
    %v292 = vsel %vm101, %v92, 0
    %294 = vmatprep.subr.mxu0 0.0
    %295 = vmatpush1.msra.mxu0 0.0
    %296 = vmatprep.subr.mxu0 0.0
    %297 = vmatpush1.msra.mxu0 0.0
    %298 = vmatprep.subr.mxu0 0.0
    %299 = vmatpush1.msra.mxu0 0.0
    %300 = vmatprep.subr.mxu0 0.0
    %301 = vmatpush1.msra.mxu0 0.0
    %302 = vmatprep.subr.mxu0 0.0
    %303 = vmatpush1.msra.mxu0 0.0
    %304 = vmatprep.subr.mxu0 0.0
    %305 = vmatpush1.msra.mxu0 0.0
    %306 = vmatprep.subr.mxu0 0.0
    %307 = vmatpush1.msra.mxu0 0.0
    %308 = vmatprep.subr.mxu0 0.0
    %309 = vmatpush1.msra.mxu0 0.0
    %310 = vmatprep.subr.mxu0 0.0
    %311 = vmatpush1.msra.mxu0 0.0
    %312 = vmatprep.subr.mxu0 0.0
    %313 = vmatpush1.msra.mxu0 0.0
    %314 = vmatprep.subr.mxu0 0.0
    %315 = vmatpush1.msra.mxu0 0.0
    %316 = vmatprep.subr.mxu0 0.0
    %317 = vmatpush1.msra.mxu0 0.0
    %318 = vmatprep.subr.mxu0 0.0
    %319 = vmatpush1.msra.mxu0 0.0
    %320 = vmatprep.subr.mxu0 0.0
    %321 = vmatpush1.msra.mxu0 0.0
    %322 = vmatprep.subr.mxu0 0.0
    %323 = vmatpush1.msra.mxu0 0.0
    %324 = vmatprep.subr.mxu0 0.0
    %325 = vmatpush1.msra.mxu0 %v93
    %326 = vmatprep.subr.mxu0 0.0
    %327 = vmatpush2.msra.mxu0 0.0
    %328 = vmatprep.subr.mxu0 0.0
    %329 = vmatpush2.msra.mxu0 0.0
    %330 = vmatprep.subr.mxu0 0.0
    %331 = vmatpush2.msra.mxu0 0.0
    %332 = vmatprep.subr.mxu0 0.0
    %333 = vmatpush2.msra.mxu0 0.0
    %334 = vmatprep.subr.mxu0 0.0
    %335 = vmatpush2.msra.mxu0 0.0
    %336 = vmatprep.subr.mxu0 0.0
    %337 = vmatpush2.msra.mxu0 0.0
    %338 = vmatprep.subr.mxu0 0.0
    %339 = vmatpush2.msra.mxu0 0.0
    %340 = vmatprep.subr.mxu0 0.0
    %341 = vmatpush2.msra.mxu0 0.0
    %342 = vmatprep.subr.mxu0 0.0
    %343 = vmatpush2.msra.mxu0 0.0
    %344 = vmatprep.subr.mxu0 0.0
    %345 = vmatpush2.msra.mxu0 0.0
    %346 = vmatprep.subr.mxu0 0.0
    %347 = vmatpush2.msra.mxu0 0.0
    %348 = vmatprep.subr.mxu0 0.0
    %349 = vmatpush2.msra.mxu0 0.0
    %350 = vmatprep.subr.mxu0 0.0
    %351 = vmatpush2.msra.mxu0 0.0
    %352 = vmatprep.subr.mxu0 0.0
    %353 = vmatpush2.msra.mxu0 0.0
    %354 = vmatprep.subr.mxu0 0.0
    %355 = vmatpush2.msra.mxu0 0.0
    %356 = vmatprep.subr.mxu0 0.0
    %357 = vmatpush2.msra.mxu0 0.0
    %358 = vmatprep.mubr.f32.mxu0 0.0
    %359 = vmatmul.mubr.f32.gmra.mxu0 %v103
    %v360 = vpop.f32.mrf.mxu0
    %v361 = vadd.f32 %v99, %v360
    %v362 = vpop.f32.mrf.mxu0
    %363 = vmatprep.mubr.f32.mxu0 0.0
    %364 = vmatmul.mubr.f32.gmra.mxu0 %v106
    %v365 = vpop.f32.mrf.mxu0
    %v366 = vadd.f32 %v99, %v365
    %v367 = vpop.f32.mrf.mxu0
    %368 = vmatprep.mubr.f32.mxu0 0.0
    %369 = vmatmul.mubr.f32.gmra.mxu0 %v109
    %v370 = vpop.f32.mrf.mxu0
    %v371 = vadd.f32 %v99, %v370
    %v372 = vpop.f32.mrf.mxu0
    %373 = vmatprep.mubr.f32.mxu0 0.0
    %374 = vmatmul.mubr.f32.gmra.mxu0 %v112
    %v375 = vpop.f32.mrf.mxu0
    %v376 = vadd.f32 %v99, %v375
    %v377 = vpop.f32.mrf.mxu0
    %378 = vmatprep.mubr.f32.mxu0 0.0
    %379 = vmatmul.mubr.f32.gmra.mxu0 %v115
    %v380 = vpop.f32.mrf.mxu0
    %v381 = vadd.f32 %v99, %v380
    %v382 = vpop.f32.mrf.mxu0
    %383 = vmatprep.mubr.f32.mxu0 0.0
    %384 = vmatmul.mubr.f32.gmra.mxu0 %v118
    %v385 = vpop.f32.mrf.mxu0
    %v386 = vadd.f32 %v99, %v385
    %v387 = vpop.f32.mrf.mxu0
    %388 = vmatprep.mubr.f32.mxu0 0.0
    %389 = vmatmul.mubr.f32.gmra.mxu0 %v121
    %v390 = vpop.f32.mrf.mxu0
    %v391 = vadd.f32 %v99, %v390
    %v392 = vpop.f32.mrf.mxu0
    %393 = vmatprep.mubr.f32.mxu0 0.0
    %394 = vmatmul.mubr.f32.gmra.mxu0 %v124
    %v395 = vpop.f32.mrf.mxu0
    %v396 = vadd.f32 %v99, %v395
    %v397 = vpop.f32.mrf.mxu0
    %398 = vmatprep.mubr.f32.mxu0 0.0
    %399 = vmatmul.mubr.f32.gmra.mxu0 %v127
    %v400 = vpop.f32.mrf.mxu0
    %v401 = vadd.f32 %v99, %v400
    %v402 = vpop.f32.mrf.mxu0
    %403 = vmatprep.mubr.f32.mxu0 0.0
    %404 = vmatmul.mubr.f32.gmra.mxu0 %v130
    %v405 = vpop.f32.mrf.mxu0
    %v406 = vadd.f32 %v99, %v405
    %v407 = vpop.f32.mrf.mxu0
    %408 = vmatprep.mubr.f32.mxu0 0.0
    %409 = vmatmul.mubr.f32.gmra.mxu0 %v133
    %v410 = vpop.f32.mrf.mxu0
    %v411 = vadd.f32 %v99, %v410
    %v412 = vpop.f32.mrf.mxu0
    %413 = vmatprep.mubr.f32.mxu0 0.0
    %414 = vmatmul.mubr.f32.gmra.mxu0 %v136
    %v415 = vpop.f32.mrf.mxu0
    %v416 = vadd.f32 %v99, %v415
    %v417 = vpop.f32.mrf.mxu0
    %418 = vmatprep.mubr.f32.mxu0 0.0
    %419 = vmatmul.mubr.f32.gmra.mxu0 %v139
    %v420 = vpop.f32.mrf.mxu0
    %v421 = vadd.f32 %v99, %v420
    %v422 = vpop.f32.mrf.mxu0
    %423 = vmatprep.mubr.f32.mxu0 0.0
    %424 = vmatmul.mubr.f32.gmra.mxu0 %v142
    %v425 = vpop.f32.mrf.mxu0
    %v426 = vadd.f32 %v99, %v425
    %v427 = vpop.f32.mrf.mxu0
    %428 = vmatprep.mubr.f32.mxu0 0.0
    %429 = vmatmul.mubr.f32.gmra.mxu0 %v145
    %v430 = vpop.f32.mrf.mxu0
    %v431 = vadd.f32 %v99, %v430
    %v432 = vpop.f32.mrf.mxu0
    %433 = vmatprep.mubr.f32.mxu0 0.0
    %434 = vmatmul.mubr.f32.gmra.mxu0 %v148
    %v435 = vpop.f32.mrf.mxu0
    %v436 = vadd.f32 %v99, %v435
    %v437 = vpop.f32.mrf.mxu0
    %438 = vmatprep.mubr.f32.mxu0 0.0
    %439 = vmatmul.mubr.f32.gmra.mxu0 %v151
    %v440 = vpop.f32.mrf.mxu0
    %v441 = vadd.f32 %v99, %v440
    %v442 = vpop.f32.mrf.mxu0
    %443 = vmatprep.mubr.f32.mxu0 0.0
    %444 = vmatmul.mubr.f32.gmra.mxu0 %v154
    %v445 = vpop.f32.mrf.mxu0
    %v446 = vadd.f32 %v99, %v445
    %v447 = vpop.f32.mrf.mxu0
    %448 = vmatprep.mubr.f32.mxu0 0.0
    %449 = vmatmul.mubr.f32.gmra.mxu0 %v157
    %v450 = vpop.f32.mrf.mxu0
    %v451 = vadd.f32 %v99, %v450
    %v452 = vpop.f32.mrf.mxu0
    %453 = vmatprep.mubr.f32.mxu0 0.0
    %454 = vmatmul.mubr.f32.gmra.mxu0 %v160
    %v455 = vpop.f32.mrf.mxu0
    %v456 = vadd.f32 %v99, %v455
    %v457 = vpop.f32.mrf.mxu0
    %458 = vmatprep.mubr.f32.mxu0 0.0
    %459 = vmatmul.mubr.f32.gmra.mxu0 %v163
    %v460 = vpop.f32.mrf.mxu0
    %v461 = vadd.f32 %v99, %v460
    %v462 = vpop.f32.mrf.mxu0
    %463 = vmatprep.mubr.f32.mxu0 0.0
    %464 = vmatmul.mubr.f32.gmra.mxu0 %v166
    %v465 = vpop.f32.mrf.mxu0
    %v466 = vadd.f32 %v99, %v465
    %v467 = vpop.f32.mrf.mxu0
    %468 = vmatprep.mubr.f32.mxu0 0.0
    %469 = vmatmul.mubr.f32.gmra.mxu0 %v169
    %v470 = vpop.f32.mrf.mxu0
    %v471 = vadd.f32 %v99, %v470
    %v472 = vpop.f32.mrf.mxu0
    %473 = vmatprep.mubr.f32.mxu0 0.0
    %474 = vmatmul.mubr.f32.gmra.mxu0 %v172
    %v475 = vpop.f32.mrf.mxu0
    %v476 = vadd.f32 %v99, %v475
    %v477 = vpop.f32.mrf.mxu0
    %478 = vmatprep.mubr.f32.mxu0 0.0
    %479 = vmatmul.mubr.f32.gmra.mxu0 %v175
    %v480 = vpop.f32.mrf.mxu0
    %v481 = vadd.f32 %v99, %v480
    %v482 = vpop.f32.mrf.mxu0
    %483 = vmatprep.mubr.f32.mxu0 0.0
    %484 = vmatmul.mubr.f32.gmra.mxu0 %v178
    %v485 = vpop.f32.mrf.mxu0
    %v486 = vadd.f32 %v99, %v485
    %v487 = vpop.f32.mrf.mxu0
    %488 = vmatprep.mubr.f32.mxu0 0.0
    %489 = vmatmul.mubr.f32.gmra.mxu0 %v181
    %v490 = vpop.f32.mrf.mxu0
    %v491 = vadd.f32 %v99, %v490
    %v492 = vpop.f32.mrf.mxu0
    %493 = vmatprep.mubr.f32.mxu0 0.0
    %494 = vmatmul.mubr.f32.gmra.mxu0 %v184
    %v495 = vpop.f32.mrf.mxu0
    %v496 = vadd.f32 %v99, %v495
    %v497 = vpop.f32.mrf.mxu0
    %498 = vmatprep.mubr.f32.mxu0 0.0
    %499 = vmatmul.mubr.f32.gmra.mxu0 %v187
    %v500 = vpop.f32.mrf.mxu0
    %v501 = vadd.f32 %v99, %v500
    %v502 = vpop.f32.mrf.mxu0
    %503 = vmatprep.mubr.f32.mxu0 0.0
    %504 = vmatmul.mubr.f32.gmra.mxu0 %v190
    %v505 = vpop.f32.mrf.mxu0
    %v506 = vadd.f32 %v99, %v505
    %v507 = vpop.f32.mrf.mxu0
    %508 = vmatprep.mubr.f32.mxu0 0.0
    %509 = vmatmul.mubr.f32.gmra.mxu0 %v193
    %v510 = vpop.f32.mrf.mxu0
    %v511 = vadd.f32 %v99, %v510
    %v512 = vpop.f32.mrf.mxu0
    %513 = vmatprep.mubr.f32.mxu0 0.0
    %514 = vmatmul.mubr.f32.gmra.mxu0 %v196
    %v515 = vpop.f32.mrf.mxu0
    %v516 = vadd.f32 %v99, %v515
    %v517 = vpop.f32.mrf.mxu0
    %518 = vmatprep.mubr.f32.mxu0 0.0
    %519 = vmatmul.mubr.f32.gmra.mxu0 %v199
    %v520 = vpop.f32.mrf.mxu0
    %v521 = vadd.f32 %v99, %v520
    %v522 = vpop.f32.mrf.mxu0
    %523 = vmatprep.mubr.f32.mxu0 0.0
    %524 = vmatmul.mubr.f32.gmra.mxu0 %v202
    %v525 = vpop.f32.mrf.mxu0
    %v526 = vadd.f32 %v99, %v525
    %v527 = vpop.f32.mrf.mxu0
    %528 = vmatprep.mubr.f32.mxu0 0.0
    %529 = vmatmul.mubr.f32.gmra.mxu0 %v205
    %v530 = vpop.f32.mrf.mxu0
    %v531 = vadd.f32 %v99, %v530
    %v532 = vpop.f32.mrf.mxu0
    %533 = vmatprep.mubr.f32.mxu0 0.0
    %534 = vmatmul.mubr.f32.gmra.mxu0 %v208
    %v535 = vpop.f32.mrf.mxu0
    %v536 = vadd.f32 %v99, %v535
    %v537 = vpop.f32.mrf.mxu0
    %538 = vmatprep.mubr.f32.mxu0 0.0
    %539 = vmatmul.mubr.f32.gmra.mxu0 %v211
    %v540 = vpop.f32.mrf.mxu0
    %v541 = vadd.f32 %v99, %v540
    %v542 = vpop.f32.mrf.mxu0
    %543 = vmatprep.mubr.f32.mxu0 0.0
    %544 = vmatmul.mubr.f32.gmra.mxu0 %v214
    %v545 = vpop.f32.mrf.mxu0
    %v546 = vadd.f32 %v99, %v545
    %v547 = vpop.f32.mrf.mxu0
    %548 = vmatprep.mubr.f32.mxu0 0.0
    %549 = vmatmul.mubr.f32.gmra.mxu0 %v217
    %v550 = vpop.f32.mrf.mxu0
    %v551 = vadd.f32 %v99, %v550
    %v552 = vpop.f32.mrf.mxu0
    %553 = vmatprep.mubr.f32.mxu0 0.0
    %554 = vmatmul.mubr.f32.gmra.mxu0 %v220
    %v555 = vpop.f32.mrf.mxu0
    %v556 = vadd.f32 %v99, %v555
    %v557 = vpop.f32.mrf.mxu0
    %558 = vmatprep.mubr.f32.mxu0 0.0
    %559 = vmatmul.mubr.f32.gmra.mxu0 %v223
    %v560 = vpop.f32.mrf.mxu0
    %v561 = vadd.f32 %v99, %v560
    %v562 = vpop.f32.mrf.mxu0
    %563 = vmatprep.mubr.f32.mxu0 0.0
    %564 = vmatmul.mubr.f32.gmra.mxu0 %v226
    %v565 = vpop.f32.mrf.mxu0
    %v566 = vadd.f32 %v99, %v565
    %v567 = vpop.f32.mrf.mxu0
    %568 = vmatprep.mubr.f32.mxu0 0.0
    %569 = vmatmul.mubr.f32.gmra.mxu0 %v229
    %v570 = vpop.f32.mrf.mxu0
    %v571 = vadd.f32 %v99, %v570
    %v572 = vpop.f32.mrf.mxu0
    %573 = vmatprep.mubr.f32.mxu0 0.0
    %574 = vmatmul.mubr.f32.gmra.mxu0 %v232
    %v575 = vpop.f32.mrf.mxu0
    %v576 = vadd.f32 %v99, %v575
    %v577 = vpop.f32.mrf.mxu0
    %578 = vmatprep.mubr.f32.mxu0 0.0
    %579 = vmatmul.mubr.f32.gmra.mxu0 %v235
    %v580 = vpop.f32.mrf.mxu0
    %v581 = vadd.f32 %v99, %v580
    %v582 = vpop.f32.mrf.mxu0
    %583 = vmatprep.mubr.f32.mxu0 0.0
    %584 = vmatmul.mubr.f32.gmra.mxu0 %v238
    %v585 = vpop.f32.mrf.mxu0
    %v586 = vadd.f32 %v99, %v585
    %v587 = vpop.f32.mrf.mxu0
    %588 = vmatprep.mubr.f32.mxu0 0.0
    %589 = vmatmul.mubr.f32.gmra.mxu0 %v241
    %v590 = vpop.f32.mrf.mxu0
    %v591 = vadd.f32 %v99, %v590
    %v592 = vpop.f32.mrf.mxu0
    %593 = vmatprep.mubr.f32.mxu0 0.0
    %594 = vmatmul.mubr.f32.gmra.mxu0 %v244
    %v595 = vpop.f32.mrf.mxu0
    %v596 = vadd.f32 %v99, %v595
    %v597 = vpop.f32.mrf.mxu0
    %598 = vmatprep.mubr.f32.mxu0 0.0
    %599 = vmatmul.mubr.f32.gmra.mxu0 %v247
    %v600 = vpop.f32.mrf.mxu0
    %v601 = vadd.f32 %v99, %v600
    %v602 = vpop.f32.mrf.mxu0
    %603 = vmatprep.mubr.f32.mxu0 0.0
    %604 = vmatmul.mubr.f32.gmra.mxu0 %v250
    %v605 = vpop.f32.mrf.mxu0
    %v606 = vadd.f32 %v99, %v605
    %v607 = vpop.f32.mrf.mxu0
    %608 = vmatprep.mubr.f32.mxu0 0.0
    %609 = vmatmul.mubr.f32.gmra.mxu0 %v253
    %v610 = vpop.f32.mrf.mxu0
    %v611 = vadd.f32 %v99, %v610
    %v612 = vpop.f32.mrf.mxu0
    %613 = vmatprep.mubr.f32.mxu0 0.0
    %614 = vmatmul.mubr.f32.gmra.mxu0 %v256
    %v615 = vpop.f32.mrf.mxu0
    %v616 = vadd.f32 %v99, %v615
    %v617 = vpop.f32.mrf.mxu0
    %618 = vmatprep.mubr.f32.mxu0 0.0
    %619 = vmatmul.mubr.f32.gmra.mxu0 %v259
    %v620 = vpop.f32.mrf.mxu0
    %v621 = vadd.f32 %v99, %v620
    %v622 = vpop.f32.mrf.mxu0
    %623 = vmatprep.mubr.f32.mxu0 0.0
    %624 = vmatmul.mubr.f32.gmra.mxu0 %v262
    %v625 = vpop.f32.mrf.mxu0
    %v626 = vadd.f32 %v99, %v625
    %v627 = vpop.f32.mrf.mxu0
    %628 = vmatprep.mubr.f32.mxu0 0.0
    %629 = vmatmul.mubr.f32.gmra.mxu0 %v265
    %v630 = vpop.f32.mrf.mxu0
    %v631 = vadd.f32 %v99, %v630
    %v632 = vpop.f32.mrf.mxu0
    %633 = vmatprep.mubr.f32.mxu0 0.0
    %634 = vmatmul.mubr.f32.gmra.mxu0 %v268
    %v635 = vpop.f32.mrf.mxu0
    %v636 = vadd.f32 %v99, %v635
    %v637 = vpop.f32.mrf.mxu0
    %638 = vmatprep.mubr.f32.mxu0 0.0
    %639 = vmatmul.mubr.f32.gmra.mxu0 %v271
    %v640 = vpop.f32.mrf.mxu0
    %v641 = vadd.f32 %v99, %v640
    %v642 = vpop.f32.mrf.mxu0
    %643 = vmatprep.mubr.f32.mxu0 0.0
    %644 = vmatmul.mubr.f32.gmra.mxu0 %v274
    %v645 = vpop.f32.mrf.mxu0
    %v646 = vadd.f32 %v99, %v645
    %v647 = vpop.f32.mrf.mxu0
    %648 = vmatprep.mubr.f32.mxu0 0.0
    %649 = vmatmul.mubr.f32.gmra.mxu0 %v277
    %v650 = vpop.f32.mrf.mxu0
    %v651 = vadd.f32 %v99, %v650
    %v652 = vpop.f32.mrf.mxu0
    %653 = vmatprep.mubr.f32.mxu0 0.0
    %654 = vmatmul.mubr.f32.gmra.mxu0 %v280
    %v655 = vpop.f32.mrf.mxu0
    %v656 = vadd.f32 %v99, %v655
    %v657 = vpop.f32.mrf.mxu0
    %658 = vmatprep.mubr.f32.mxu0 0.0
    %659 = vmatmul.mubr.f32.gmra.mxu0 %v283
    %v660 = vpop.f32.mrf.mxu0
    %v661 = vadd.f32 %v99, %v660
    %v662 = vpop.f32.mrf.mxu0
    %663 = vmatprep.mubr.f32.mxu0 0.0
    %664 = vmatmul.mubr.f32.gmra.mxu0 %v286
    %v665 = vpop.f32.mrf.mxu0
    %v666 = vadd.f32 %v99, %v665
    %v667 = vpop.f32.mrf.mxu0
    %668 = vmatprep.mubr.f32.mxu0 0.0
    %669 = vmatmul.mubr.f32.gmra.mxu0 %v289
    %v670 = vpop.f32.mrf.mxu0
    %v671 = vadd.f32 %v99, %v670
    %v672 = vpop.f32.mrf.mxu0
    %673 = vmatprep.mubr.f32.mxu0 0.0
    %674 = vmatmul.mubr.f32.gmra.mxu0 %v292
    %v675 = vpop.f32.mrf.mxu0
    %v676 = vadd.f32 %v99, %v675
    %v677 = vpop.f32.mrf.mxu0
    %678 = vdwg.mxu0
    %v679 = vmax.f32 %v361, 0.0
    %v680 = vmax.f32 %v366, 0.0
    %v681 = vmax.f32 %v371, 0.0
    %v682 = vmax.f32 %v376, 0.0
    %v683 = vmax.f32 %v381, 0.0
    %v684 = vmax.f32 %v386, 0.0
    %v685 = vmax.f32 %v391, 0.0
    %v686 = vmax.f32 %v396, 0.0
    %v687 = vmax.f32 %v401, 0.0
    %v688 = vmax.f32 %v406, 0.0
    %v689 = vmax.f32 %v411, 0.0
    %v690 = vmax.f32 %v416, 0.0
    %v691 = vmax.f32 %v421, 0.0
    %v692 = vmax.f32 %v426, 0.0
    %v693 = vmax.f32 %v431, 0.0
    %v694 = vmax.f32 %v436, 0.0
    %v695 = vmax.f32 %v441, 0.0
    %v696 = vmax.f32 %v446, 0.0
    %v697 = vmax.f32 %v451, 0.0
    %v698 = vmax.f32 %v456, 0.0
    %v699 = vmax.f32 %v461, 0.0
    %v700 = vmax.f32 %v466, 0.0
    %v701 = vmax.f32 %v471, 0.0
    %v702 = vmax.f32 %v476, 0.0
    %v703 = vmax.f32 %v481, 0.0
    %v704 = vmax.f32 %v486, 0.0
    %v705 = vmax.f32 %v491, 0.0
    %v706 = vmax.f32 %v496, 0.0
    %v707 = vmax.f32 %v501, 0.0
    %v708 = vmax.f32 %v506, 0.0
    %v709 = vmax.f32 %v511, 0.0
    %v710 = vmax.f32 %v516, 0.0
    %v711 = vmax.f32 %v521, 0.0
    %v712 = vmax.f32 %v526, 0.0
    %v713 = vmax.f32 %v531, 0.0
    %v714 = vmax.f32 %v536, 0.0
    %v715 = vmax.f32 %v541, 0.0
    %v716 = vmax.f32 %v546, 0.0
    %v717 = vmax.f32 %v551, 0.0
    %v718 = vmax.f32 %v556, 0.0
    %v719 = vmax.f32 %v561, 0.0
    %v720 = vmax.f32 %v566, 0.0
    %v721 = vmax.f32 %v571, 0.0
    %v722 = vmax.f32 %v576, 0.0
    %v723 = vmax.f32 %v581, 0.0
    %v724 = vmax.f32 %v586, 0.0
    %v725 = vmax.f32 %v591, 0.0
    %v726 = vmax.f32 %v596, 0.0
    %v727 = vmax.f32 %v601, 0.0
    %v728 = vmax.f32 %v606, 0.0
    %v729 = vmax.f32 %v611, 0.0
    %v730 = vmax.f32 %v616, 0.0
    %v731 = vmax.f32 %v621, 0.0
    %v732 = vmax.f32 %v626, 0.0
    %v733 = vmax.f32 %v631, 0.0
    %v734 = vmax.f32 %v636, 0.0
    %v735 = vmax.f32 %v641, 0.0
    %v736 = vmax.f32 %v646, 0.0
    %v737 = vmax.f32 %v651, 0.0
    %v738 = vmax.f32 %v656, 0.0
    %v739 = vmax.f32 %v661, 0.0
    %v740 = vmax.f32 %v666, 0.0
    %v741 = vmax.f32 %v671, 0.0
    %v742 = vmax.f32 %v676, 0.0
    %v743 = vld [vmem:[%s3] sm:$0xff]
    %v744 = vld [vmem:[%s3 + $0x8] sm:$0xff]
    %v745 = vld [vmem:[%s3 + $0x10] sm:$0xff]
    %v746 = vld [vmem:[%s3 + $0x18] sm:$0xff]
    %v747 = vld [vmem:[%s4] sm:$0x1]
    %v749 = vlaneseq
    %v750 = vshrl.u32 %v749, 7
    %v751 = vsub.s32 0, %v750
    %v752 = vrot.slane %v747, %v751
    %vm754 = vcmask 261120
    %v756 = vsel %vm754, %v679, 0
    %v759 = vsel %vm754, %v680, 0
    %v762 = vsel %vm754, %v681, 0
    %v765 = vsel %vm754, %v682, 0
    %v768 = vsel %vm754, %v683, 0
    %v771 = vsel %vm754, %v684, 0
    %v774 = vsel %vm754, %v685, 0
    %v777 = vsel %vm754, %v686, 0
    %v780 = vsel %vm754, %v687, 0
    %v783 = vsel %vm754, %v688, 0
    %v786 = vsel %vm754, %v689, 0
    %v789 = vsel %vm754, %v690, 0
    %v792 = vsel %vm754, %v691, 0
    %v795 = vsel %vm754, %v692, 0
    %v798 = vsel %vm754, %v693, 0
    %v801 = vsel %vm754, %v694, 0
    %v804 = vsel %vm754, %v695, 0
    %v807 = vsel %vm754, %v696, 0
    %v810 = vsel %vm754, %v697, 0
    %v813 = vsel %vm754, %v698, 0
    %v816 = vsel %vm754, %v699, 0
    %v819 = vsel %vm754, %v700, 0
    %v822 = vsel %vm754, %v701, 0
    %v825 = vsel %vm754, %v702, 0
    %v828 = vsel %vm754, %v703, 0
    %v831 = vsel %vm754, %v704, 0
    %v834 = vsel %vm754, %v705, 0
    %v837 = vsel %vm754, %v706, 0
    %v840 = vsel %vm754, %v707, 0
    %v843 = vsel %vm754, %v708, 0
    %v846 = vsel %vm754, %v709, 0
    %v849 = vsel %vm754, %v710, 0
    %v852 = vsel %vm754, %v711, 0
    %v855 = vsel %vm754, %v712, 0
    %v858 = vsel %vm754, %v713, 0
    %v861 = vsel %vm754, %v714, 0
    %v864 = vsel %vm754, %v715, 0
    %v867 = vsel %vm754, %v716, 0
    %v870 = vsel %vm754, %v717, 0
    %v873 = vsel %vm754, %v718, 0
    %v876 = vsel %vm754, %v719, 0
    %v879 = vsel %vm754, %v720, 0
    %v882 = vsel %vm754, %v721, 0
    %v885 = vsel %vm754, %v722, 0
    %v888 = vsel %vm754, %v723, 0
    %v891 = vsel %vm754, %v724, 0
    %v894 = vsel %vm754, %v725, 0
    %v897 = vsel %vm754, %v726, 0
    %v900 = vsel %vm754, %v727, 0
    %v903 = vsel %vm754, %v728, 0
    %v906 = vsel %vm754, %v729, 0
    %v909 = vsel %vm754, %v730, 0
    %v912 = vsel %vm754, %v731, 0
    %v915 = vsel %vm754, %v732, 0
    %v918 = vsel %vm754, %v733, 0
    %v921 = vsel %vm754, %v734, 0
    %v924 = vsel %vm754, %v735, 0
    %v927 = vsel %vm754, %v736, 0
    %v930 = vsel %vm754, %v737, 0
    %v933 = vsel %vm754, %v738, 0
    %v936 = vsel %vm754, %v739, 0
    %v939 = vsel %vm754, %v740, 0
    %v942 = vsel %vm754, %v741, 0
    %v945 = vsel %vm754, %v742, 0
    %947 = vmatprep.subr.mxu0 0.0
    %948 = vmatpush1.msra.mxu0 0.0
    %949 = vmatprep.subr.mxu0 0.0
    %950 = vmatpush1.msra.mxu0 0.0
    %951 = vmatprep.subr.mxu0 0.0
    %952 = vmatpush1.msra.mxu0 0.0
    %953 = vmatprep.subr.mxu0 0.0
    %954 = vmatpush1.msra.mxu0 0.0
    %955 = vmatprep.subr.mxu0 0.0
    %956 = vmatpush1.msra.mxu0 0.0
    %957 = vmatprep.subr.mxu0 0.0
    %958 = vmatpush1.msra.mxu0 0.0
    %959 = vmatprep.subr.mxu0 0.0
    %960 = vmatpush1.msra.mxu0 0.0
    %961 = vmatprep.subr.mxu0 0.0
    %962 = vmatpush1.msra.mxu0 0.0
    %963 = vmatprep.subr.mxu0 0.0
    %964 = vmatpush1.msra.mxu0 0.0
    %965 = vmatprep.subr.mxu0 0.0
    %966 = vmatpush1.msra.mxu0 0.0
    %967 = vmatprep.subr.mxu0 0.0
    %968 = vmatpush1.msra.mxu0 0.0
    %969 = vmatprep.subr.mxu0 0.0
    %970 = vmatpush1.msra.mxu0 0.0
    %971 = vmatprep.subr.mxu0 0.0
    %972 = vmatpush1.msra.mxu0 %v746
    %973 = vmatprep.subr.mxu0 0.0
    %974 = vmatpush1.msra.mxu0 %v745
    %975 = vmatprep.subr.mxu0 0.0
    %976 = vmatpush1.msra.mxu0 %v744
    %977 = vmatprep.subr.mxu0 0.0
    %978 = vmatpush1.msra.mxu0 %v743
    %979 = vmatprep.subr.mxu0 0.0
    %980 = vmatpush2.msra.mxu0 0.0
    %981 = vmatprep.subr.mxu0 0.0
    %982 = vmatpush2.msra.mxu0 0.0
    %983 = vmatprep.subr.mxu0 0.0
    %984 = vmatpush2.msra.mxu0 0.0
    %985 = vmatprep.subr.mxu0 0.0
    %986 = vmatpush2.msra.mxu0 0.0
    %987 = vmatprep.subr.mxu0 0.0
    %988 = vmatpush2.msra.mxu0 0.0
    %989 = vmatprep.subr.mxu0 0.0
    %990 = vmatpush2.msra.mxu0 0.0
    %991 = vmatprep.subr.mxu0 0.0
    %992 = vmatpush2.msra.mxu0 0.0
    %993 = vmatprep.subr.mxu0 0.0
    %994 = vmatpush2.msra.mxu0 0.0
    %995 = vmatprep.subr.mxu0 0.0
    %996 = vmatpush2.msra.mxu0 0.0
    %997 = vmatprep.subr.mxu0 0.0
    %998 = vmatpush2.msra.mxu0 0.0
    %999 = vmatprep.subr.mxu0 0.0
    %1000 = vmatpush2.msra.mxu0 0.0
    %1001 = vmatprep.subr.mxu0 0.0
    %1002 = vmatpush2.msra.mxu0 0.0
    %1003 = vmatprep.subr.mxu0 0.0
    %1004 = vmatpush2.msra.mxu0 0.0
    %1005 = vmatprep.subr.mxu0 0.0
    %1006 = vmatpush2.msra.mxu0 0.0
    %1007 = vmatprep.subr.mxu0 0.0
    %1008 = vmatpush2.msra.mxu0 0.0
    %1009 = vmatprep.subr.mxu0 0.0
    %1010 = vmatpush2.msra.mxu0 0.0
    %1011 = vmatprep.mubr.f32.mxu0 0.0
    %1012 = vmatmul.mubr.f32.gmra.mxu0 %v756
    %v1013 = vpop.f32.mrf.mxu0
    %v1014 = vadd.f32 %v752, %v1013
    %v1015 = vpop.f32.mrf.mxu0
    %1016 = vmatprep.mubr.f32.mxu0 0.0
    %1017 = vmatmul.mubr.f32.gmra.mxu0 %v759
    %v1018 = vpop.f32.mrf.mxu0
    %v1019 = vadd.f32 %v752, %v1018
    %v1020 = vpop.f32.mrf.mxu0
    %1021 = vmatprep.mubr.f32.mxu0 0.0
    %1022 = vmatmul.mubr.f32.gmra.mxu0 %v762
    %v1023 = vpop.f32.mrf.mxu0
    %v1024 = vadd.f32 %v752, %v1023
    %v1025 = vpop.f32.mrf.mxu0
    %1026 = vmatprep.mubr.f32.mxu0 0.0
    %1027 = vmatmul.mubr.f32.gmra.mxu0 %v765
    %v1028 = vpop.f32.mrf.mxu0
    %v1029 = vadd.f32 %v752, %v1028
    %v1030 = vpop.f32.mrf.mxu0
    %1031 = vmatprep.mubr.f32.mxu0 0.0
    %1032 = vmatmul.mubr.f32.gmra.mxu0 %v768
    %v1033 = vpop.f32.mrf.mxu0
    %v1034 = vadd.f32 %v752, %v1033
    %v1035 = vpop.f32.mrf.mxu0
    %1036 = vmatprep.mubr.f32.mxu0 0.0
    %1037 = vmatmul.mubr.f32.gmra.mxu0 %v771
    %v1038 = vpop.f32.mrf.mxu0
    %v1039 = vadd.f32 %v752, %v1038
    %v1040 = vpop.f32.mrf.mxu0
    %1041 = vmatprep.mubr.f32.mxu0 0.0
    %1042 = vmatmul.mubr.f32.gmra.mxu0 %v774
    %v1043 = vpop.f32.mrf.mxu0
    %v1044 = vadd.f32 %v752, %v1043
    %v1045 = vpop.f32.mrf.mxu0
    %1046 = vmatprep.mubr.f32.mxu0 0.0
    %1047 = vmatmul.mubr.f32.gmra.mxu0 %v777
    %v1048 = vpop.f32.mrf.mxu0
    %v1049 = vadd.f32 %v752, %v1048
    %v1050 = vpop.f32.mrf.mxu0
    %1051 = vmatprep.mubr.f32.mxu0 0.0
    %1052 = vmatmul.mubr.f32.gmra.mxu0 %v780
    %v1053 = vpop.f32.mrf.mxu0
    %v1054 = vadd.f32 %v752, %v1053
    %v1055 = vpop.f32.mrf.mxu0
    %1056 = vmatprep.mubr.f32.mxu0 0.0
    %1057 = vmatmul.mubr.f32.gmra.mxu0 %v783
    %v1058 = vpop.f32.mrf.mxu0
    %v1059 = vadd.f32 %v752, %v1058
    %v1060 = vpop.f32.mrf.mxu0
    %1061 = vmatprep.mubr.f32.mxu0 0.0
    %1062 = vmatmul.mubr.f32.gmra.mxu0 %v786
    %v1063 = vpop.f32.mrf.mxu0
    %v1064 = vadd.f32 %v752, %v1063
    %v1065 = vpop.f32.mrf.mxu0
    %1066 = vmatprep.mubr.f32.mxu0 0.0
    %1067 = vmatmul.mubr.f32.gmra.mxu0 %v789
    %v1068 = vpop.f32.mrf.mxu0
    %v1069 = vadd.f32 %v752, %v1068
    %v1070 = vpop.f32.mrf.mxu0
    %1071 = vmatprep.mubr.f32.mxu0 0.0
    %1072 = vmatmul.mubr.f32.gmra.mxu0 %v792
    %v1073 = vpop.f32.mrf.mxu0
    %v1074 = vadd.f32 %v752, %v1073
    %v1075 = vpop.f32.mrf.mxu0
    %1076 = vmatprep.mubr.f32.mxu0 0.0
    %1077 = vmatmul.mubr.f32.gmra.mxu0 %v795
    %v1078 = vpop.f32.mrf.mxu0
    %v1079 = vadd.f32 %v752, %v1078
    %v1080 = vpop.f32.mrf.mxu0
    %1081 = vmatprep.mubr.f32.mxu0 0.0
    %1082 = vmatmul.mubr.f32.gmra.mxu0 %v798
    %v1083 = vpop.f32.mrf.mxu0
    %v1084 = vadd.f32 %v752, %v1083
    %v1085 = vpop.f32.mrf.mxu0
    %1086 = vmatprep.mubr.f32.mxu0 0.0
    %1087 = vmatmul.mubr.f32.gmra.mxu0 %v801
    %v1088 = vpop.f32.mrf.mxu0
    %v1089 = vadd.f32 %v752, %v1088
    %v1090 = vpop.f32.mrf.mxu0
    %1091 = vmatprep.mubr.f32.mxu0 0.0
    %1092 = vmatmul.mubr.f32.gmra.mxu0 %v804
    %v1093 = vpop.f32.mrf.mxu0
    %v1094 = vadd.f32 %v752, %v1093
    %v1095 = vpop.f32.mrf.mxu0
    %1096 = vmatprep.mubr.f32.mxu0 0.0
    %1097 = vmatmul.mubr.f32.gmra.mxu0 %v807
    %v1098 = vpop.f32.mrf.mxu0
    %v1099 = vadd.f32 %v752, %v1098
    %v1100 = vpop.f32.mrf.mxu0
    %1101 = vmatprep.mubr.f32.mxu0 0.0
    %1102 = vmatmul.mubr.f32.gmra.mxu0 %v810
    %v1103 = vpop.f32.mrf.mxu0
    %v1104 = vadd.f32 %v752, %v1103
    %v1105 = vpop.f32.mrf.mxu0
    %1106 = vmatprep.mubr.f32.mxu0 0.0
    %1107 = vmatmul.mubr.f32.gmra.mxu0 %v813
    %v1108 = vpop.f32.mrf.mxu0
    %v1109 = vadd.f32 %v752, %v1108
    %v1110 = vpop.f32.mrf.mxu0
    %1111 = vmatprep.mubr.f32.mxu0 0.0
    %1112 = vmatmul.mubr.f32.gmra.mxu0 %v816
    %v1113 = vpop.f32.mrf.mxu0
    %v1114 = vadd.f32 %v752, %v1113
    %v1115 = vpop.f32.mrf.mxu0
    %1116 = vmatprep.mubr.f32.mxu0 0.0
    %1117 = vmatmul.mubr.f32.gmra.mxu0 %v819
    %v1118 = vpop.f32.mrf.mxu0
    %v1119 = vadd.f32 %v752, %v1118
    %v1120 = vpop.f32.mrf.mxu0
    %1121 = vmatprep.mubr.f32.mxu0 0.0
    %1122 = vmatmul.mubr.f32.gmra.mxu0 %v822
    %v1123 = vpop.f32.mrf.mxu0
    %v1124 = vadd.f32 %v752, %v1123
    %v1125 = vpop.f32.mrf.mxu0
    %1126 = vmatprep.mubr.f32.mxu0 0.0
    %1127 = vmatmul.mubr.f32.gmra.mxu0 %v825
    %v1128 = vpop.f32.mrf.mxu0
    %v1129 = vadd.f32 %v752, %v1128
    %v1130 = vpop.f32.mrf.mxu0
    %1131 = vmatprep.mubr.f32.mxu0 0.0
    %1132 = vmatmul.mubr.f32.gmra.mxu0 %v828
    %v1133 = vpop.f32.mrf.mxu0
    %v1134 = vadd.f32 %v752, %v1133
    %v1135 = vpop.f32.mrf.mxu0
    %1136 = vmatprep.mubr.f32.mxu0 0.0
    %1137 = vmatmul.mubr.f32.gmra.mxu0 %v831
    %v1138 = vpop.f32.mrf.mxu0
    %v1139 = vadd.f32 %v752, %v1138
    %v1140 = vpop.f32.mrf.mxu0
    %1141 = vmatprep.mubr.f32.mxu0 0.0
    %1142 = vmatmul.mubr.f32.gmra.mxu0 %v834
    %v1143 = vpop.f32.mrf.mxu0
    %v1144 = vadd.f32 %v752, %v1143
    %v1145 = vpop.f32.mrf.mxu0
    %1146 = vmatprep.mubr.f32.mxu0 0.0
    %1147 = vmatmul.mubr.f32.gmra.mxu0 %v837
    %v1148 = vpop.f32.mrf.mxu0
    %v1149 = vadd.f32 %v752, %v1148
    %v1150 = vpop.f32.mrf.mxu0
    %1151 = vmatprep.mubr.f32.mxu0 0.0
    %1152 = vmatmul.mubr.f32.gmra.mxu0 %v840
    %v1153 = vpop.f32.mrf.mxu0
    %v1154 = vadd.f32 %v752, %v1153
    %v1155 = vpop.f32.mrf.mxu0
    %1156 = vmatprep.mubr.f32.mxu0 0.0
    %1157 = vmatmul.mubr.f32.gmra.mxu0 %v843
    %v1158 = vpop.f32.mrf.mxu0
    %v1159 = vadd.f32 %v752, %v1158
    %v1160 = vpop.f32.mrf.mxu0
    %1161 = vmatprep.mubr.f32.mxu0 0.0
    %1162 = vmatmul.mubr.f32.gmra.mxu0 %v846
    %v1163 = vpop.f32.mrf.mxu0
    %v1164 = vadd.f32 %v752, %v1163
    %v1165 = vpop.f32.mrf.mxu0
    %1166 = vmatprep.mubr.f32.mxu0 0.0
    %1167 = vmatmul.mubr.f32.gmra.mxu0 %v849
    %v1168 = vpop.f32.mrf.mxu0
    %v1169 = vadd.f32 %v752, %v1168
    %v1170 = vpop.f32.mrf.mxu0
    %1171 = vmatprep.mubr.f32.mxu0 0.0
    %1172 = vmatmul.mubr.f32.gmra.mxu0 %v852
    %v1173 = vpop.f32.mrf.mxu0
    %v1174 = vadd.f32 %v752, %v1173
    %v1175 = vpop.f32.mrf.mxu0
    %1176 = vmatprep.mubr.f32.mxu0 0.0
    %1177 = vmatmul.mubr.f32.gmra.mxu0 %v855
    %v1178 = vpop.f32.mrf.mxu0
    %v1179 = vadd.f32 %v752, %v1178
    %v1180 = vpop.f32.mrf.mxu0
    %1181 = vmatprep.mubr.f32.mxu0 0.0
    %1182 = vmatmul.mubr.f32.gmra.mxu0 %v858
    %v1183 = vpop.f32.mrf.mxu0
    %v1184 = vadd.f32 %v752, %v1183
    %v1185 = vpop.f32.mrf.mxu0
    %1186 = vmatprep.mubr.f32.mxu0 0.0
    %1187 = vmatmul.mubr.f32.gmra.mxu0 %v861
    %v1188 = vpop.f32.mrf.mxu0
    %v1189 = vadd.f32 %v752, %v1188
    %v1190 = vpop.f32.mrf.mxu0
    %1191 = vmatprep.mubr.f32.mxu0 0.0
    %1192 = vmatmul.mubr.f32.gmra.mxu0 %v864
    %v1193 = vpop.f32.mrf.mxu0
    %v1194 = vadd.f32 %v752, %v1193
    %v1195 = vpop.f32.mrf.mxu0
    %1196 = vmatprep.mubr.f32.mxu0 0.0
    %1197 = vmatmul.mubr.f32.gmra.mxu0 %v867
    %v1198 = vpop.f32.mrf.mxu0
    %v1199 = vadd.f32 %v752, %v1198
    %v1200 = vpop.f32.mrf.mxu0
    %1201 = vmatprep.mubr.f32.mxu0 0.0
    %1202 = vmatmul.mubr.f32.gmra.mxu0 %v870
    %v1203 = vpop.f32.mrf.mxu0
    %v1204 = vadd.f32 %v752, %v1203
    %v1205 = vpop.f32.mrf.mxu0
    %1206 = vmatprep.mubr.f32.mxu0 0.0
    %1207 = vmatmul.mubr.f32.gmra.mxu0 %v873
    %v1208 = vpop.f32.mrf.mxu0
    %v1209 = vadd.f32 %v752, %v1208
    %v1210 = vpop.f32.mrf.mxu0
    %1211 = vmatprep.mubr.f32.mxu0 0.0
    %1212 = vmatmul.mubr.f32.gmra.mxu0 %v876
    %v1213 = vpop.f32.mrf.mxu0
    %v1214 = vadd.f32 %v752, %v1213
    %v1215 = vpop.f32.mrf.mxu0
    %1216 = vmatprep.mubr.f32.mxu0 0.0
    %1217 = vmatmul.mubr.f32.gmra.mxu0 %v879
    %v1218 = vpop.f32.mrf.mxu0
    %v1219 = vadd.f32 %v752, %v1218
    %v1220 = vpop.f32.mrf.mxu0
    %1221 = vmatprep.mubr.f32.mxu0 0.0
    %1222 = vmatmul.mubr.f32.gmra.mxu0 %v882
    %v1223 = vpop.f32.mrf.mxu0
    %v1224 = vadd.f32 %v752, %v1223
    %v1225 = vpop.f32.mrf.mxu0
    %1226 = vmatprep.mubr.f32.mxu0 0.0
    %1227 = vmatmul.mubr.f32.gmra.mxu0 %v885
    %v1228 = vpop.f32.mrf.mxu0
    %v1229 = vadd.f32 %v752, %v1228
    %v1230 = vpop.f32.mrf.mxu0
    %1231 = vmatprep.mubr.f32.mxu0 0.0
    %1232 = vmatmul.mubr.f32.gmra.mxu0 %v888
    %v1233 = vpop.f32.mrf.mxu0
    %v1234 = vadd.f32 %v752, %v1233
    %v1235 = vpop.f32.mrf.mxu0
    %1236 = vmatprep.mubr.f32.mxu0 0.0
    %1237 = vmatmul.mubr.f32.gmra.mxu0 %v891
    %v1238 = vpop.f32.mrf.mxu0
    %v1239 = vadd.f32 %v752, %v1238
    %v1240 = vpop.f32.mrf.mxu0
    %1241 = vmatprep.mubr.f32.mxu0 0.0
    %1242 = vmatmul.mubr.f32.gmra.mxu0 %v894
    %v1243 = vpop.f32.mrf.mxu0
    %v1244 = vadd.f32 %v752, %v1243
    %v1245 = vpop.f32.mrf.mxu0
    %1246 = vmatprep.mubr.f32.mxu0 0.0
    %1247 = vmatmul.mubr.f32.gmra.mxu0 %v897
    %v1248 = vpop.f32.mrf.mxu0
    %v1249 = vadd.f32 %v752, %v1248
    %v1250 = vpop.f32.mrf.mxu0
    %1251 = vmatprep.mubr.f32.mxu0 0.0
    %1252 = vmatmul.mubr.f32.gmra.mxu0 %v900
    %v1253 = vpop.f32.mrf.mxu0
    %v1254 = vadd.f32 %v752, %v1253
    %v1255 = vpop.f32.mrf.mxu0
    %1256 = vmatprep.mubr.f32.mxu0 0.0
    %1257 = vmatmul.mubr.f32.gmra.mxu0 %v903
    %v1258 = vpop.f32.mrf.mxu0
    %v1259 = vadd.f32 %v752, %v1258
    %v1260 = vpop.f32.mrf.mxu0
    %1261 = vmatprep.mubr.f32.mxu0 0.0
    %1262 = vmatmul.mubr.f32.gmra.mxu0 %v906
    %v1263 = vpop.f32.mrf.mxu0
    %v1264 = vadd.f32 %v752, %v1263
    %v1265 = vpop.f32.mrf.mxu0
    %1266 = vmatprep.mubr.f32.mxu0 0.0
    %1267 = vmatmul.mubr.f32.gmra.mxu0 %v909
    %v1268 = vpop.f32.mrf.mxu0
    %v1269 = vadd.f32 %v752, %v1268
    %v1270 = vpop.f32.mrf.mxu0
    %1271 = vmatprep.mubr.f32.mxu0 0.0
    %1272 = vmatmul.mubr.f32.gmra.mxu0 %v912
    %v1273 = vpop.f32.mrf.mxu0
    %v1274 = vadd.f32 %v752, %v1273
    %v1275 = vpop.f32.mrf.mxu0
    %1276 = vmatprep.mubr.f32.mxu0 0.0
    %1277 = vmatmul.mubr.f32.gmra.mxu0 %v915
    %v1278 = vpop.f32.mrf.mxu0
    %v1279 = vadd.f32 %v752, %v1278
    %v1280 = vpop.f32.mrf.mxu0
    %1281 = vmatprep.mubr.f32.mxu0 0.0
    %1282 = vmatmul.mubr.f32.gmra.mxu0 %v918
    %v1283 = vpop.f32.mrf.mxu0
    %v1284 = vadd.f32 %v752, %v1283
    %v1285 = vpop.f32.mrf.mxu0
    %1286 = vmatprep.mubr.f32.mxu0 0.0
    %1287 = vmatmul.mubr.f32.gmra.mxu0 %v921
    %v1288 = vpop.f32.mrf.mxu0
    %v1289 = vadd.f32 %v752, %v1288
    %v1290 = vpop.f32.mrf.mxu0
    %1291 = vmatprep.mubr.f32.mxu0 0.0
    %1292 = vmatmul.mubr.f32.gmra.mxu0 %v924
    %v1293 = vpop.f32.mrf.mxu0
    %v1294 = vadd.f32 %v752, %v1293
    %v1295 = vpop.f32.mrf.mxu0
    %1296 = vmatprep.mubr.f32.mxu0 0.0
    %1297 = vmatmul.mubr.f32.gmra.mxu0 %v927
    %v1298 = vpop.f32.mrf.mxu0
    %v1299 = vadd.f32 %v752, %v1298
    %v1300 = vpop.f32.mrf.mxu0
    %1301 = vmatprep.mubr.f32.mxu0 0.0
    %1302 = vmatmul.mubr.f32.gmra.mxu0 %v930
    %v1303 = vpop.f32.mrf.mxu0
    %v1304 = vadd.f32 %v752, %v1303
    %v1305 = vpop.f32.mrf.mxu0
    %1306 = vmatprep.mubr.f32.mxu0 0.0
    %1307 = vmatmul.mubr.f32.gmra.mxu0 %v933
    %v1308 = vpop.f32.mrf.mxu0
    %v1309 = vadd.f32 %v752, %v1308
    %v1310 = vpop.f32.mrf.mxu0
    %1311 = vmatprep.mubr.f32.mxu0 0.0
    %1312 = vmatmul.mubr.f32.gmra.mxu0 %v936
    %v1313 = vpop.f32.mrf.mxu0
    %v1314 = vadd.f32 %v752, %v1313
    %v1315 = vpop.f32.mrf.mxu0
    %1316 = vmatprep.mubr.f32.mxu0 0.0
    %1317 = vmatmul.mubr.f32.gmra.mxu0 %v939
    %v1318 = vpop.f32.mrf.mxu0
    %v1319 = vadd.f32 %v752, %v1318
    %v1320 = vpop.f32.mrf.mxu0
    %1321 = vmatprep.mubr.f32.mxu0 0.0
    %1322 = vmatmul.mubr.f32.gmra.mxu0 %v942
    %v1323 = vpop.f32.mrf.mxu0
    %v1324 = vadd.f32 %v752, %v1323
    %v1325 = vpop.f32.mrf.mxu0
    %1326 = vmatprep.mubr.f32.mxu0 0.0
    %1327 = vmatmul.mubr.f32.gmra.mxu0 %v945
    %v1328 = vpop.f32.mrf.mxu0
    %v1329 = vadd.f32 %v752, %v1328
    %v1330 = vpop.f32.mrf.mxu0
    %1331 = vdwg.mxu0
    %v1332 = vmax.f32 %v1014, 0.0
    %v1333 = vmax.f32 %v1019, 0.0
    %v1334 = vmax.f32 %v1024, 0.0
    %v1335 = vmax.f32 %v1029, 0.0
    %v1336 = vmax.f32 %v1034, 0.0
    %v1337 = vmax.f32 %v1039, 0.0
    %v1338 = vmax.f32 %v1044, 0.0
    %v1339 = vmax.f32 %v1049, 0.0
    %v1340 = vmax.f32 %v1054, 0.0
    %v1341 = vmax.f32 %v1059, 0.0
    %v1342 = vmax.f32 %v1064, 0.0
    %v1343 = vmax.f32 %v1069, 0.0
    %v1344 = vmax.f32 %v1074, 0.0
    %v1345 = vmax.f32 %v1079, 0.0
    %v1346 = vmax.f32 %v1084, 0.0
    %v1347 = vmax.f32 %v1089, 0.0
    %v1348 = vmax.f32 %v1094, 0.0
    %v1349 = vmax.f32 %v1099, 0.0
    %v1350 = vmax.f32 %v1104, 0.0
    %v1351 = vmax.f32 %v1109, 0.0
    %v1352 = vmax.f32 %v1114, 0.0
    %v1353 = vmax.f32 %v1119, 0.0
    %v1354 = vmax.f32 %v1124, 0.0
    %v1355 = vmax.f32 %v1129, 0.0
    %v1356 = vmax.f32 %v1134, 0.0
    %v1357 = vmax.f32 %v1139, 0.0
    %v1358 = vmax.f32 %v1144, 0.0
    %v1359 = vmax.f32 %v1149, 0.0
    %v1360 = vmax.f32 %v1154, 0.0
    %v1361 = vmax.f32 %v1159, 0.0
    %v1362 = vmax.f32 %v1164, 0.0
    %v1363 = vmax.f32 %v1169, 0.0
    %v1364 = vmax.f32 %v1174, 0.0
    %v1365 = vmax.f32 %v1179, 0.0
    %v1366 = vmax.f32 %v1184, 0.0
    %v1367 = vmax.f32 %v1189, 0.0
    %v1368 = vmax.f32 %v1194, 0.0
    %v1369 = vmax.f32 %v1199, 0.0
    %v1370 = vmax.f32 %v1204, 0.0
    %v1371 = vmax.f32 %v1209, 0.0
    %v1372 = vmax.f32 %v1214, 0.0
    %v1373 = vmax.f32 %v1219, 0.0
    %v1374 = vmax.f32 %v1224, 0.0
    %v1375 = vmax.f32 %v1229, 0.0
    %v1376 = vmax.f32 %v1234, 0.0
    %v1377 = vmax.f32 %v1239, 0.0
    %v1378 = vmax.f32 %v1244, 0.0
    %v1379 = vmax.f32 %v1249, 0.0
    %v1380 = vmax.f32 %v1254, 0.0
    %v1381 = vmax.f32 %v1259, 0.0
    %v1382 = vmax.f32 %v1264, 0.0
    %v1383 = vmax.f32 %v1269, 0.0
    %v1384 = vmax.f32 %v1274, 0.0
    %v1385 = vmax.f32 %v1279, 0.0
    %v1386 = vmax.f32 %v1284, 0.0
    %v1387 = vmax.f32 %v1289, 0.0
    %v1388 = vmax.f32 %v1294, 0.0
    %v1389 = vmax.f32 %v1299, 0.0
    %v1390 = vmax.f32 %v1304, 0.0
    %v1391 = vmax.f32 %v1309, 0.0
    %v1392 = vmax.f32 %v1314, 0.0
    %v1393 = vmax.f32 %v1319, 0.0
    %v1394 = vmax.f32 %v1324, 0.0
    %v1395 = vmax.f32 %v1329, 0.0
    %v1396 = vld [vmem:[%s5] sm:$0x1]
    %v1398 = vlaneseq
    %v1399 = vshrl.u32 %v1398, 7
    %v1400 = vsub.s32 0, %v1399
    %v1401 = vrot.slane %v1396, %v1400
    %v1403 = vmul.f32 %v1332, %v1401
    %v1404 = vmul.f32 %v1333, %v1401
    %v1405 = vmul.f32 %v1334, %v1401
    %v1406 = vmul.f32 %v1335, %v1401
    %v1407 = vmul.f32 %v1336, %v1401
    %v1408 = vmul.f32 %v1337, %v1401
    %v1409 = vmul.f32 %v1338, %v1401
    %v1410 = vmul.f32 %v1339, %v1401
    %v1411 = vmul.f32 %v1340, %v1401
    %v1412 = vmul.f32 %v1341, %v1401
    %v1413 = vmul.f32 %v1342, %v1401
    %v1414 = vmul.f32 %v1343, %v1401
    %v1415 = vmul.f32 %v1344, %v1401
    %v1416 = vmul.f32 %v1345, %v1401
    %v1417 = vmul.f32 %v1346, %v1401
    %v1418 = vmul.f32 %v1347, %v1401
    %v1419 = vmul.f32 %v1348, %v1401
    %v1420 = vmul.f32 %v1349, %v1401
    %v1421 = vmul.f32 %v1350, %v1401
    %v1422 = vmul.f32 %v1351, %v1401
    %v1423 = vmul.f32 %v1352, %v1401
    %v1424 = vmul.f32 %v1353, %v1401
    %v1425 = vmul.f32 %v1354, %v1401
    %v1426 = vmul.f32 %v1355, %v1401
    %v1427 = vmul.f32 %v1356, %v1401
    %v1428 = vmul.f32 %v1357, %v1401
    %v1429 = vmul.f32 %v1358, %v1401
    %v1430 = vmul.f32 %v1359, %v1401
    %v1431 = vmul.f32 %v1360, %v1401
    %v1432 = vmul.f32 %v1361, %v1401
    %v1433 = vmul.f32 %v1362, %v1401
    %v1434 = vmul.f32 %v1363, %v1401
    %v1435 = vmul.f32 %v1364, %v1401
    %v1436 = vmul.f32 %v1365, %v1401
    %v1437 = vmul.f32 %v1366, %v1401
    %v1438 = vmul.f32 %v1367, %v1401
    %v1439 = vmul.f32 %v1368, %v1401
    %v1440 = vmul.f32 %v1369, %v1401
    %v1441 = vmul.f32 %v1370, %v1401
    %v1442 = vmul.f32 %v1371, %v1401
    %v1443 = vmul.f32 %v1372, %v1401
    %v1444 = vmul.f32 %v1373, %v1401
    %v1445 = vmul.f32 %v1374, %v1401
    %v1446 = vmul.f32 %v1375, %v1401
    %v1447 = vmul.f32 %v1376, %v1401
    %v1448 = vmul.f32 %v1377, %v1401
    %v1449 = vmul.f32 %v1378, %v1401
    %v1450 = vmul.f32 %v1379, %v1401
    %v1451 = vmul.f32 %v1380, %v1401
    %v1452 = vmul.f32 %v1381, %v1401
    %v1453 = vmul.f32 %v1382, %v1401
    %v1454 = vmul.f32 %v1383, %v1401
    %v1455 = vmul.f32 %v1384, %v1401
    %v1456 = vmul.f32 %v1385, %v1401
    %v1457 = vmul.f32 %v1386, %v1401
    %v1458 = vmul.f32 %v1387, %v1401
    %v1459 = vmul.f32 %v1388, %v1401
    %v1460 = vmul.f32 %v1389, %v1401
    %v1461 = vmul.f32 %v1390, %v1401
    %v1462 = vmul.f32 %v1391, %v1401
    %v1463 = vmul.f32 %v1392, %v1401
    %v1464 = vmul.f32 %v1393, %v1401
    %v1465 = vmul.f32 %v1394, %v1401
    %v1466 = vmul.f32 %v1395, %v1401
    %v1467 = vsel %vm754, %v1403, 0.0
    %1468 = vadd.xlane.f32.xlu0 %v1467
    %v1469 = vpop.xlane.xlu0 %1468
    %v1470 = vsel %vm754, %v1404, 0.0
    %1471 = vadd.xlane.f32.xlu0 %v1470
    %v1472 = vpop.xlane.xlu0 %1471
    %v1473 = vsel %vm754, %v1405, 0.0
    %1474 = vadd.xlane.f32.xlu0 %v1473
    %v1475 = vpop.xlane.xlu0 %1474
    %v1476 = vsel %vm754, %v1406, 0.0
    %1477 = vadd.xlane.f32.xlu0 %v1476
    %v1478 = vpop.xlane.xlu0 %1477
    %v1479 = vsel %vm754, %v1407, 0.0
    %1480 = vadd.xlane.f32.xlu0 %v1479
    %v1481 = vpop.xlane.xlu0 %1480
    %v1482 = vsel %vm754, %v1408, 0.0
    %1483 = vadd.xlane.f32.xlu0 %v1482
    %v1484 = vpop.xlane.xlu0 %1483
    %v1485 = vsel %vm754, %v1409, 0.0
    %1486 = vadd.xlane.f32.xlu0 %v1485
    %v1487 = vpop.xlane.xlu0 %1486
    %v1488 = vsel %vm754, %v1410, 0.0
    %1489 = vadd.xlane.f32.xlu0 %v1488
    %v1490 = vpop.xlane.xlu0 %1489
    %v1491 = vsel %vm754, %v1411, 0.0
    %1492 = vadd.xlane.f32.xlu0 %v1491
    %v1493 = vpop.xlane.xlu0 %1492
    %v1494 = vsel %vm754, %v1412, 0.0
    %1495 = vadd.xlane.f32.xlu0 %v1494
    %v1496 = vpop.xlane.xlu0 %1495
    %v1497 = vsel %vm754, %v1413, 0.0
    %1498 = vadd.xlane.f32.xlu0 %v1497
    %v1499 = vpop.xlane.xlu0 %1498
    %v1500 = vsel %vm754, %v1414, 0.0
    %1501 = vadd.xlane.f32.xlu0 %v1500
    %v1502 = vpop.xlane.xlu0 %1501
    %v1503 = vsel %vm754, %v1415, 0.0
    %1504 = vadd.xlane.f32.xlu0 %v1503
    %v1505 = vpop.xlane.xlu0 %1504
    %v1506 = vsel %vm754, %v1416, 0.0
    %1507 = vadd.xlane.f32.xlu0 %v1506
    %v1508 = vpop.xlane.xlu0 %1507
    %v1509 = vsel %vm754, %v1417, 0.0
    %1510 = vadd.xlane.f32.xlu0 %v1509
    %v1511 = vpop.xlane.xlu0 %1510
    %v1512 = vsel %vm754, %v1418, 0.0
    %1513 = vadd.xlane.f32.xlu0 %v1512
    %v1514 = vpop.xlane.xlu0 %1513
    %v1515 = vsel %vm754, %v1419, 0.0
    %1516 = vadd.xlane.f32.xlu0 %v1515
    %v1517 = vpop.xlane.xlu0 %1516
    %v1518 = vsel %vm754, %v1420, 0.0
    %1519 = vadd.xlane.f32.xlu0 %v1518
    %v1520 = vpop.xlane.xlu0 %1519
    %v1521 = vsel %vm754, %v1421, 0.0
    %1522 = vadd.xlane.f32.xlu0 %v1521
    %v1523 = vpop.xlane.xlu0 %1522
    %v1524 = vsel %vm754, %v1422, 0.0
    %1525 = vadd.xlane.f32.xlu0 %v1524
    %v1526 = vpop.xlane.xlu0 %1525
    %v1527 = vsel %vm754, %v1423, 0.0
    %1528 = vadd.xlane.f32.xlu0 %v1527
    %v1529 = vpop.xlane.xlu0 %1528
    %v1530 = vsel %vm754, %v1424, 0.0
    %1531 = vadd.xlane.f32.xlu0 %v1530
    %v1532 = vpop.xlane.xlu0 %1531
    %v1533 = vsel %vm754, %v1425, 0.0
    %1534 = vadd.xlane.f32.xlu0 %v1533
    %v1535 = vpop.xlane.xlu0 %1534
    %v1536 = vsel %vm754, %v1426, 0.0
    %1537 = vadd.xlane.f32.xlu0 %v1536
    %v1538 = vpop.xlane.xlu0 %1537
    %v1539 = vsel %vm754, %v1427, 0.0
    %1540 = vadd.xlane.f32.xlu0 %v1539
    %v1541 = vpop.xlane.xlu0 %1540
    %v1542 = vsel %vm754, %v1428, 0.0
    %1543 = vadd.xlane.f32.xlu0 %v1542
    %v1544 = vpop.xlane.xlu0 %1543
    %v1545 = vsel %vm754, %v1429, 0.0
    %1546 = vadd.xlane.f32.xlu0 %v1545
    %v1547 = vpop.xlane.xlu0 %1546
    %v1548 = vsel %vm754, %v1430, 0.0
    %1549 = vadd.xlane.f32.xlu0 %v1548
    %v1550 = vpop.xlane.xlu0 %1549
    %v1551 = vsel %vm754, %v1431, 0.0
    %1552 = vadd.xlane.f32.xlu0 %v1551
    %v1553 = vpop.xlane.xlu0 %1552
    %v1554 = vsel %vm754, %v1432, 0.0
    %1555 = vadd.xlane.f32.xlu0 %v1554
    %v1556 = vpop.xlane.xlu0 %1555
    %v1557 = vsel %vm754, %v1433, 0.0
    %1558 = vadd.xlane.f32.xlu0 %v1557
    %v1559 = vpop.xlane.xlu0 %1558
    %v1560 = vsel %vm754, %v1434, 0.0
    %1561 = vadd.xlane.f32.xlu0 %v1560
    %v1562 = vpop.xlane.xlu0 %1561
    %v1563 = vsel %vm754, %v1435, 0.0
    %1564 = vadd.xlane.f32.xlu0 %v1563
    %v1565 = vpop.xlane.xlu0 %1564
    %v1566 = vsel %vm754, %v1436, 0.0
    %1567 = vadd.xlane.f32.xlu0 %v1566
    %v1568 = vpop.xlane.xlu0 %1567
    %v1569 = vsel %vm754, %v1437, 0.0
    %1570 = vadd.xlane.f32.xlu0 %v1569
    %v1571 = vpop.xlane.xlu0 %1570
    %v1572 = vsel %vm754, %v1438, 0.0
    %1573 = vadd.xlane.f32.xlu0 %v1572
    %v1574 = vpop.xlane.xlu0 %1573
    %v1575 = vsel %vm754, %v1439, 0.0
    %1576 = vadd.xlane.f32.xlu0 %v1575
    %v1577 = vpop.xlane.xlu0 %1576
    %v1578 = vsel %vm754, %v1440, 0.0
    %1579 = vadd.xlane.f32.xlu0 %v1578
    %v1580 = vpop.xlane.xlu0 %1579
    %v1581 = vsel %vm754, %v1441, 0.0
    %1582 = vadd.xlane.f32.xlu0 %v1581
    %v1583 = vpop.xlane.xlu0 %1582
    %v1584 = vsel %vm754, %v1442, 0.0
    %1585 = vadd.xlane.f32.xlu0 %v1584
    %v1586 = vpop.xlane.xlu0 %1585
    %v1587 = vsel %vm754, %v1443, 0.0
    %1588 = vadd.xlane.f32.xlu0 %v1587
    %v1589 = vpop.xlane.xlu0 %1588
    %v1590 = vsel %vm754, %v1444, 0.0
    %1591 = vadd.xlane.f32.xlu0 %v1590
    %v1592 = vpop.xlane.xlu0 %1591
    %v1593 = vsel %vm754, %v1445, 0.0
    %1594 = vadd.xlane.f32.xlu0 %v1593
    %v1595 = vpop.xlane.xlu0 %1594
    %v1596 = vsel %vm754, %v1446, 0.0
    %1597 = vadd.xlane.f32.xlu0 %v1596
    %v1598 = vpop.xlane.xlu0 %1597
    %v1599 = vsel %vm754, %v1447, 0.0
    %1600 = vadd.xlane.f32.xlu0 %v1599
    %v1601 = vpop.xlane.xlu0 %1600
    %v1602 = vsel %vm754, %v1448, 0.0
    %1603 = vadd.xlane.f32.xlu0 %v1602
    %v1604 = vpop.xlane.xlu0 %1603
    %v1605 = vsel %vm754, %v1449, 0.0
    %1606 = vadd.xlane.f32.xlu0 %v1605
    %v1607 = vpop.xlane.xlu0 %1606
    %v1608 = vsel %vm754, %v1450, 0.0
    %1609 = vadd.xlane.f32.xlu0 %v1608
    %v1610 = vpop.xlane.xlu0 %1609
    %v1611 = vsel %vm754, %v1451, 0.0
    %1612 = vadd.xlane.f32.xlu0 %v1611
    %v1613 = vpop.xlane.xlu0 %1612
    %v1614 = vsel %vm754, %v1452, 0.0
    %1615 = vadd.xlane.f32.xlu0 %v1614
    %v1616 = vpop.xlane.xlu0 %1615
    %v1617 = vsel %vm754, %v1453, 0.0
    %1618 = vadd.xlane.f32.xlu0 %v1617
    %v1619 = vpop.xlane.xlu0 %1618
    %v1620 = vsel %vm754, %v1454, 0.0
    %1621 = vadd.xlane.f32.xlu0 %v1620
    %v1622 = vpop.xlane.xlu0 %1621
    %v1623 = vsel %vm754, %v1455, 0.0
    %1624 = vadd.xlane.f32.xlu0 %v1623
    %v1625 = vpop.xlane.xlu0 %1624
    %v1626 = vsel %vm754, %v1456, 0.0
    %1627 = vadd.xlane.f32.xlu0 %v1626
    %v1628 = vpop.xlane.xlu0 %1627
    %v1629 = vsel %vm754, %v1457, 0.0
    %1630 = vadd.xlane.f32.xlu0 %v1629
    %v1631 = vpop.xlane.xlu0 %1630
    %v1632 = vsel %vm754, %v1458, 0.0
    %1633 = vadd.xlane.f32.xlu0 %v1632
    %v1634 = vpop.xlane.xlu0 %1633
    %v1635 = vsel %vm754, %v1459, 0.0
    %1636 = vadd.xlane.f32.xlu0 %v1635
    %v1637 = vpop.xlane.xlu0 %1636
    %v1638 = vsel %vm754, %v1460, 0.0
    %1639 = vadd.xlane.f32.xlu0 %v1638
    %v1640 = vpop.xlane.xlu0 %1639
    %v1641 = vsel %vm754, %v1461, 0.0
    %1642 = vadd.xlane.f32.xlu0 %v1641
    %v1643 = vpop.xlane.xlu0 %1642
    %v1644 = vsel %vm754, %v1462, 0.0
    %1645 = vadd.xlane.f32.xlu0 %v1644
    %v1646 = vpop.xlane.xlu0 %1645
    %v1647 = vsel %vm754, %v1463, 0.0
    %1648 = vadd.xlane.f32.xlu0 %v1647
    %v1649 = vpop.xlane.xlu0 %1648
    %v1650 = vsel %vm754, %v1464, 0.0
    %1651 = vadd.xlane.f32.xlu0 %v1650
    %v1652 = vpop.xlane.xlu0 %1651
    %v1653 = vsel %vm754, %v1465, 0.0
    %1654 = vadd.xlane.f32.xlu0 %v1653
    %v1655 = vpop.xlane.xlu0 %1654
    %v1656 = vsel %vm754, %v1466, 0.0
    %1657 = vadd.xlane.f32.xlu0 %v1656
    %v1658 = vpop.xlane.xlu0 %1657
    %v1659 = vld [vmem:[#allocation2] sm:$0x1]
    %v1661 = vlaneseq
    %v1662 = vshrl.u32 %v1661, 7
    %v1663 = vsub.s32 0, %v1662
    %v1664 = vrot.slane %v1659, %v1663
    %v1666 = vadd.f32 %v1469, %v1664
    %v1667 = vadd.f32 %v1472, %v1664
    %v1668 = vadd.f32 %v1475, %v1664
    %v1669 = vadd.f32 %v1478, %v1664
    %v1670 = vadd.f32 %v1481, %v1664
    %v1671 = vadd.f32 %v1484, %v1664
    %v1672 = vadd.f32 %v1487, %v1664
    %v1673 = vadd.f32 %v1490, %v1664
    %v1674 = vadd.f32 %v1493, %v1664
    %v1675 = vadd.f32 %v1496, %v1664
    %v1676 = vadd.f32 %v1499, %v1664
    %v1677 = vadd.f32 %v1502, %v1664
    %v1678 = vadd.f32 %v1505, %v1664
    %v1679 = vadd.f32 %v1508, %v1664
    %v1680 = vadd.f32 %v1511, %v1664
    %v1681 = vadd.f32 %v1514, %v1664
    %v1682 = vadd.f32 %v1517, %v1664
    %v1683 = vadd.f32 %v1520, %v1664
    %v1684 = vadd.f32 %v1523, %v1664
    %v1685 = vadd.f32 %v1526, %v1664
    %v1686 = vadd.f32 %v1529, %v1664
    %v1687 = vadd.f32 %v1532, %v1664
    %v1688 = vadd.f32 %v1535, %v1664
    %v1689 = vadd.f32 %v1538, %v1664
    %v1690 = vadd.f32 %v1541, %v1664
    %v1691 = vadd.f32 %v1544, %v1664
    %v1692 = vadd.f32 %v1547, %v1664
    %v1693 = vadd.f32 %v1550, %v1664
    %v1694 = vadd.f32 %v1553, %v1664
    %v1695 = vadd.f32 %v1556, %v1664
    %v1696 = vadd.f32 %v1559, %v1664
    %v1697 = vadd.f32 %v1562, %v1664
    %v1698 = vadd.f32 %v1565, %v1664
    %v1699 = vadd.f32 %v1568, %v1664
    %v1700 = vadd.f32 %v1571, %v1664
    %v1701 = vadd.f32 %v1574, %v1664
    %v1702 = vadd.f32 %v1577, %v1664
    %v1703 = vadd.f32 %v1580, %v1664
    %v1704 = vadd.f32 %v1583, %v1664
    %v1705 = vadd.f32 %v1586, %v1664
    %v1706 = vadd.f32 %v1589, %v1664
    %v1707 = vadd.f32 %v1592, %v1664
    %v1708 = vadd.f32 %v1595, %v1664
    %v1709 = vadd.f32 %v1598, %v1664
    %v1710 = vadd.f32 %v1601, %v1664
    %v1711 = vadd.f32 %v1604, %v1664
    %v1712 = vadd.f32 %v1607, %v1664
    %v1713 = vadd.f32 %v1610, %v1664
    %v1714 = vadd.f32 %v1613, %v1664
    %v1715 = vadd.f32 %v1616, %v1664
    %v1716 = vadd.f32 %v1619, %v1664
    %v1717 = vadd.f32 %v1622, %v1664
    %v1718 = vadd.f32 %v1625, %v1664
    %v1719 = vadd.f32 %v1628, %v1664
    %v1720 = vadd.f32 %v1631, %v1664
    %v1721 = vadd.f32 %v1634, %v1664
    %v1722 = vadd.f32 %v1637, %v1664
    %v1723 = vadd.f32 %v1640, %v1664
    %v1724 = vadd.f32 %v1643, %v1664
    %v1725 = vadd.f32 %v1646, %v1664
    %v1726 = vadd.f32 %v1649, %v1664
    %v1727 = vadd.f32 %v1652, %v1664
    %v1728 = vadd.f32 %v1655, %v1664
    %v1729 = vadd.f32 %v1658, %v1664
    %v1730 = vlaneseq
    %v1731 = vshrl.u32 %v1730, 7
    %v1732 = vadd.s32 %v1731, 8
    %v1733 = vadd.s32 %v1731, 16
    %v1734 = vadd.s32 %v1731, 24
    %v1735 = vadd.s32 %v1731, 32
    %v1736 = vadd.s32 %v1731, 40
    %v1737 = vadd.s32 %v1731, 48
    %v1738 = vadd.s32 %v1731, 56
    %v1739 = vadd.s32 %v1731, 64
    %v1740 = vadd.s32 %v1731, 72
    %v1741 = vadd.s32 %v1731, 80
    %v1742 = vadd.s32 %v1731, 88
    %v1743 = vadd.s32 %v1731, 96
    %v1744 = vadd.s32 %v1731, 104
    %v1745 = vadd.s32 %v1731, 112
    %v1746 = vadd.s32 %v1731, 120
    %v1747 = vadd.s32 %v1731, 128
    %v1748 = vadd.s32 %v1731, 136
    %v1749 = vadd.s32 %v1731, 144
    %v1750 = vadd.s32 %v1731, 152
    %v1751 = vadd.s32 %v1731, 160
    %v1752 = vadd.s32 %v1731, 168
    %v1753 = vadd.s32 %v1731, 176
    %v1754 = vadd.s32 %v1731, 184
    %v1755 = vadd.s32 %v1731, 192
    %v1756 = vadd.s32 %v1731, 200
    %v1757 = vadd.s32 %v1731, 208
    %v1758 = vadd.s32 %v1731, 216
    %v1759 = vadd.s32 %v1731, 224
    %v1760 = vadd.s32 %v1731, 232
    %v1761 = vadd.s32 %v1731, 240
    %v1762 = vadd.s32 %v1731, 248
    %v1763 = vadd.s32 %v1731, 256
    %v1764 = vadd.s32 %v1731, 264
    %v1765 = vadd.s32 %v1731, 272
    %v1766 = vadd.s32 %v1731, 280
    %v1767 = vadd.s32 %v1731, 288
    %v1768 = vadd.s32 %v1731, 296
    %v1769 = vadd.s32 %v1731, 304
    %v1770 = vadd.s32 %v1731, 312
    %v1771 = vadd.s32 %v1731, 320
    %v1772 = vadd.s32 %v1731, 328
    %v1773 = vadd.s32 %v1731, 336
    %v1774 = vadd.s32 %v1731, 344
    %v1775 = vadd.s32 %v1731, 352
    %v1776 = vadd.s32 %v1731, 360
    %v1777 = vadd.s32 %v1731, 368
    %v1778 = vadd.s32 %v1731, 376
    %v1779 = vadd.s32 %v1731, 384
    %v1780 = vadd.s32 %v1731, 392
    %v1781 = vadd.s32 %v1731, 400
    %v1782 = vadd.s32 %v1731, 408
    %v1783 = vadd.s32 %v1731, 416
    %v1784 = vadd.s32 %v1731, 424
    %v1785 = vadd.s32 %v1731, 432
    %v1786 = vadd.s32 %v1731, 440
    %v1787 = vadd.s32 %v1731, 448
    %v1788 = vadd.s32 %v1731, 456
    %v1789 = vadd.s32 %v1731, 464
    %v1790 = vadd.s32 %v1731, 472
    %v1791 = vadd.s32 %v1731, 480
    %v1792 = vadd.s32 %v1731, 488
    %v1793 = vadd.s32 %v1731, 496
    %v1794 = vadd.s32 %v1731, 504
    %vm1795 = vcmp.lt.s32.totalorder %v1731, 256
    %vm1796 = vcmp.lt.s32.totalorder %v1732, 256
    %vm1797 = vcmp.lt.s32.totalorder %v1733, 256
    %vm1798 = vcmp.lt.s32.totalorder %v1734, 256
    %vm1799 = vcmp.lt.s32.totalorder %v1735, 256
    %vm1800 = vcmp.lt.s32.totalorder %v1736, 256
    %vm1801 = vcmp.lt.s32.totalorder %v1737, 256
    %vm1802 = vcmp.lt.s32.totalorder %v1738, 256
    %vm1803 = vcmp.lt.s32.totalorder %v1739, 256
    %vm1804 = vcmp.lt.s32.totalorder %v1740, 256
    %vm1805 = vcmp.lt.s32.totalorder %v1741, 256
    %vm1806 = vcmp.lt.s32.totalorder %v1742, 256
    %vm1807 = vcmp.lt.s32.totalorder %v1743, 256
    %vm1808 = vcmp.lt.s32.totalorder %v1744, 256
    %vm1809 = vcmp.lt.s32.totalorder %v1745, 256
    %vm1810 = vcmp.lt.s32.totalorder %v1746, 256
    %vm1811 = vcmp.lt.s32.totalorder %v1747, 256
    %vm1812 = vcmp.lt.s32.totalorder %v1748, 256
    %vm1813 = vcmp.lt.s32.totalorder %v1749, 256
    %vm1814 = vcmp.lt.s32.totalorder %v1750, 256
    %vm1815 = vcmp.lt.s32.totalorder %v1751, 256
    %vm1816 = vcmp.lt.s32.totalorder %v1752, 256
    %vm1817 = vcmp.lt.s32.totalorder %v1753, 256
    %vm1818 = vcmp.lt.s32.totalorder %v1754, 256
    %vm1819 = vcmp.lt.s32.totalorder %v1755, 256
    %vm1820 = vcmp.lt.s32.totalorder %v1756, 256
    %vm1821 = vcmp.lt.s32.totalorder %v1757, 256
    %vm1822 = vcmp.lt.s32.totalorder %v1758, 256
    %vm1823 = vcmp.lt.s32.totalorder %v1759, 256
    %vm1824 = vcmp.lt.s32.totalorder %v1760, 256
    %vm1825 = vcmp.lt.s32.totalorder %v1761, 256
    %vm1826 = vcmp.lt.s32.totalorder %v1762, 256
    %vm1827 = vcmp.lt.s32.totalorder %v1763, 256
    %vm1828 = vcmp.lt.s32.totalorder %v1764, 256
    %vm1829 = vcmp.lt.s32.totalorder %v1765, 256
    %vm1830 = vcmp.lt.s32.totalorder %v1766, 256
    %vm1831 = vcmp.lt.s32.totalorder %v1767, 256
    %vm1832 = vcmp.lt.s32.totalorder %v1768, 256
    %vm1833 = vcmp.lt.s32.totalorder %v1769, 256
    %vm1834 = vcmp.lt.s32.totalorder %v1770, 256
    %vm1835 = vcmp.lt.s32.totalorder %v1771, 256
    %vm1836 = vcmp.lt.s32.totalorder %v1772, 256
    %vm1837 = vcmp.lt.s32.totalorder %v1773, 256
    %vm1838 = vcmp.lt.s32.totalorder %v1774, 256
    %vm1839 = vcmp.lt.s32.totalorder %v1775, 256
    %vm1840 = vcmp.lt.s32.totalorder %v1776, 256
    %vm1841 = vcmp.lt.s32.totalorder %v1777, 256
    %vm1842 = vcmp.lt.s32.totalorder %v1778, 256
    %vm1843 = vcmp.lt.s32.totalorder %v1779, 256
    %vm1844 = vcmp.lt.s32.totalorder %v1780, 256
    %vm1845 = vcmp.lt.s32.totalorder %v1781, 256
    %vm1846 = vcmp.lt.s32.totalorder %v1782, 256
    %vm1847 = vcmp.lt.s32.totalorder %v1783, 256
    %vm1848 = vcmp.lt.s32.totalorder %v1784, 256
    %vm1849 = vcmp.lt.s32.totalorder %v1785, 256
    %vm1850 = vcmp.lt.s32.totalorder %v1786, 256
    %vm1851 = vcmp.lt.s32.totalorder %v1787, 256
    %vm1852 = vcmp.lt.s32.totalorder %v1788, 256
    %vm1853 = vcmp.lt.s32.totalorder %v1789, 256
    %vm1854 = vcmp.lt.s32.totalorder %v1790, 256
    %vm1855 = vcmp.lt.s32.totalorder %v1791, 256
    %vm1856 = vcmp.lt.s32.totalorder %v1792, 256
    %vm1857 = vcmp.lt.s32.totalorder %v1793, 256
    %vm1858 = vcmp.lt.s32.totalorder %v1794, 256
    %v1859 = vsel %vm1795, %v1666, 0.0
    %v1860 = vsel %vm1796, %v1667, 0.0
    %v1861 = vsel %vm1797, %v1668, 0.0
    %v1862 = vsel %vm1798, %v1669, 0.0
    %v1863 = vsel %vm1799, %v1670, 0.0
    %v1864 = vsel %vm1800, %v1671, 0.0
    %v1865 = vsel %vm1801, %v1672, 0.0
    %v1866 = vsel %vm1802, %v1673, 0.0
    %v1867 = vsel %vm1803, %v1674, 0.0
    %v1868 = vsel %vm1804, %v1675, 0.0
    %v1869 = vsel %vm1805, %v1676, 0.0
    %v1870 = vsel %vm1806, %v1677, 0.0
    %v1871 = vsel %vm1807, %v1678, 0.0
    %v1872 = vsel %vm1808, %v1679, 0.0
    %v1873 = vsel %vm1809, %v1680, 0.0
    %v1874 = vsel %vm1810, %v1681, 0.0
    %v1875 = vsel %vm1811, %v1682, 0.0
    %v1876 = vsel %vm1812, %v1683, 0.0
    %v1877 = vsel %vm1813, %v1684, 0.0
    %v1878 = vsel %vm1814, %v1685, 0.0
    %v1879 = vsel %vm1815, %v1686, 0.0
    %v1880 = vsel %vm1816, %v1687, 0.0
    %v1881 = vsel %vm1817, %v1688, 0.0
    %v1882 = vsel %vm1818, %v1689, 0.0
    %v1883 = vsel %vm1819, %v1690, 0.0
    %v1884 = vsel %vm1820, %v1691, 0.0
    %v1885 = vsel %vm1821, %v1692, 0.0
    %v1886 = vsel %vm1822, %v1693, 0.0
    %v1887 = vsel %vm1823, %v1694, 0.0
    %v1888 = vsel %vm1824, %v1695, 0.0
    %v1889 = vsel %vm1825, %v1696, 0.0
    %v1890 = vsel %vm1826, %v1697, 0.0
    %v1891 = vsel %vm1827, %v1698, 0.0
    %v1892 = vsel %vm1828, %v1699, 0.0
    %v1893 = vsel %vm1829, %v1700, 0.0
    %v1894 = vsel %vm1830, %v1701, 0.0
    %v1895 = vsel %vm1831, %v1702, 0.0
    %v1896 = vsel %vm1832, %v1703, 0.0
    %v1897 = vsel %vm1833, %v1704, 0.0
    %v1898 = vsel %vm1834, %v1705, 0.0
    %v1899 = vsel %vm1835, %v1706, 0.0
    %v1900 = vsel %vm1836, %v1707, 0.0
    %v1901 = vsel %vm1837, %v1708, 0.0
    %v1902 = vsel %vm1838, %v1709, 0.0
    %v1903 = vsel %vm1839, %v1710, 0.0
    %v1904 = vsel %vm1840, %v1711, 0.0
    %v1905 = vsel %vm1841, %v1712, 0.0
    %v1906 = vsel %vm1842, %v1713, 0.0
    %v1907 = vsel %vm1843, %v1714, 0.0
    %v1908 = vsel %vm1844, %v1715, 0.0
    %v1909 = vsel %vm1845, %v1716, 0.0
    %v1910 = vsel %vm1846, %v1717, 0.0
    %v1911 = vsel %vm1847, %v1718, 0.0
    %v1912 = vsel %vm1848, %v1719, 0.0
    %v1913 = vsel %vm1849, %v1720, 0.0
    %v1914 = vsel %vm1850, %v1721, 0.0
    %v1915 = vsel %vm1851, %v1722, 0.0
    %v1916 = vsel %vm1852, %v1723, 0.0
    %v1917 = vsel %vm1853, %v1724, 0.0
    %v1918 = vsel %vm1854, %v1725, 0.0
    %v1919 = vsel %vm1855, %v1726, 0.0
    %v1920 = vsel %vm1856, %v1727, 0.0
    %v1921 = vsel %vm1857, %v1728, 0.0
    %v1922 = vsel %vm1858, %v1729, 0.0
    %vm1923 = vcmask 7168
    %v1924 = vsel %vm1923, %v1859, 0.0
    %v1925 = vsel %vm1923, %v1860, 0.0
    %v1926 = vadd.f32 %v1924, %v1925
    %v1927 = vsel %vm1923, %v1861, 0.0
    %v1928 = vadd.f32 %v1926, %v1927
    %v1929 = vsel %vm1923, %v1862, 0.0
    %v1930 = vadd.f32 %v1928, %v1929
    %v1931 = vsel %vm1923, %v1863, 0.0
    %v1932 = vadd.f32 %v1930, %v1931
    %v1933 = vsel %vm1923, %v1864, 0.0
    %v1934 = vadd.f32 %v1932, %v1933
    %v1935 = vsel %vm1923, %v1865, 0.0
    %v1936 = vadd.f32 %v1934, %v1935
    %v1937 = vsel %vm1923, %v1866, 0.0
    %v1938 = vadd.f32 %v1936, %v1937
    %v1939 = vsel %vm1923, %v1867, 0.0
    %v1940 = vadd.f32 %v1938, %v1939
    %v1941 = vsel %vm1923, %v1868, 0.0
    %v1942 = vadd.f32 %v1940, %v1941
    %v1943 = vsel %vm1923, %v1869, 0.0
    %v1944 = vadd.f32 %v1942, %v1943
    %v1945 = vsel %vm1923, %v1870, 0.0
    %v1946 = vadd.f32 %v1944, %v1945
    %v1947 = vsel %vm1923, %v1871, 0.0
    %v1948 = vadd.f32 %v1946, %v1947
    %v1949 = vsel %vm1923, %v1872, 0.0
    %v1950 = vadd.f32 %v1948, %v1949
    %v1951 = vsel %vm1923, %v1873, 0.0
    %v1952 = vadd.f32 %v1950, %v1951
    %v1953 = vsel %vm1923, %v1874, 0.0
    %v1954 = vadd.f32 %v1952, %v1953
    %v1955 = vsel %vm1923, %v1875, 0.0
    %v1956 = vadd.f32 %v1954, %v1955
    %v1957 = vsel %vm1923, %v1876, 0.0
    %v1958 = vadd.f32 %v1956, %v1957
    %v1959 = vsel %vm1923, %v1877, 0.0
    %v1960 = vadd.f32 %v1958, %v1959
    %v1961 = vsel %vm1923, %v1878, 0.0
    %v1962 = vadd.f32 %v1960, %v1961
    %v1963 = vsel %vm1923, %v1879, 0.0
    %v1964 = vadd.f32 %v1962, %v1963
    %v1965 = vsel %vm1923, %v1880, 0.0
    %v1966 = vadd.f32 %v1964, %v1965
    %v1967 = vsel %vm1923, %v1881, 0.0
    %v1968 = vadd.f32 %v1966, %v1967
    %v1969 = vsel %vm1923, %v1882, 0.0
    %v1970 = vadd.f32 %v1968, %v1969
    %v1971 = vsel %vm1923, %v1883, 0.0
    %v1972 = vadd.f32 %v1970, %v1971
    %v1973 = vsel %vm1923, %v1884, 0.0
    %v1974 = vadd.f32 %v1972, %v1973
    %v1975 = vsel %vm1923, %v1885, 0.0
    %v1976 = vadd.f32 %v1974, %v1975
    %v1977 = vsel %vm1923, %v1886, 0.0
    %v1978 = vadd.f32 %v1976, %v1977
    %v1979 = vsel %vm1923, %v1887, 0.0
    %v1980 = vadd.f32 %v1978, %v1979
    %v1981 = vsel %vm1923, %v1888, 0.0
    %v1982 = vadd.f32 %v1980, %v1981
    %v1983 = vsel %vm1923, %v1889, 0.0
    %v1984 = vadd.f32 %v1982, %v1983
    %v1985 = vsel %vm1923, %v1890, 0.0
    %v1986 = vadd.f32 %v1984, %v1985
    %v1987 = vsel %vm1923, %v1891, 0.0
    %v1988 = vadd.f32 %v1986, %v1987
    %v1989 = vsel %vm1923, %v1892, 0.0
    %v1990 = vadd.f32 %v1988, %v1989
    %v1991 = vsel %vm1923, %v1893, 0.0
    %v1992 = vadd.f32 %v1990, %v1991
    %v1993 = vsel %vm1923, %v1894, 0.0
    %v1994 = vadd.f32 %v1992, %v1993
    %v1995 = vsel %vm1923, %v1895, 0.0
    %v1996 = vadd.f32 %v1994, %v1995
    %v1997 = vsel %vm1923, %v1896, 0.0
    %v1998 = vadd.f32 %v1996, %v1997
    %v1999 = vsel %vm1923, %v1897, 0.0
    %v2000 = vadd.f32 %v1998, %v1999
    %v2001 = vsel %vm1923, %v1898, 0.0
    %v2002 = vadd.f32 %v2000, %v2001
    %v2003 = vsel %vm1923, %v1899, 0.0
    %v2004 = vadd.f32 %v2002, %v2003
    %v2005 = vsel %vm1923, %v1900, 0.0
    %v2006 = vadd.f32 %v2004, %v2005
    %v2007 = vsel %vm1923, %v1901, 0.0
    %v2008 = vadd.f32 %v2006, %v2007
    %v2009 = vsel %vm1923, %v1902, 0.0
    %v2010 = vadd.f32 %v2008, %v2009
    %v2011 = vsel %vm1923, %v1903, 0.0
    %v2012 = vadd.f32 %v2010, %v2011
    %v2013 = vsel %vm1923, %v1904, 0.0
    %v2014 = vadd.f32 %v2012, %v2013
    %v2015 = vsel %vm1923, %v1905, 0.0
    %v2016 = vadd.f32 %v2014, %v2015
    %v2017 = vsel %vm1923, %v1906, 0.0
    %v2018 = vadd.f32 %v2016, %v2017
    %v2019 = vsel %vm1923, %v1907, 0.0
    %v2020 = vadd.f32 %v2018, %v2019
    %v2021 = vsel %vm1923, %v1908, 0.0
    %v2022 = vadd.f32 %v2020, %v2021
    %v2023 = vsel %vm1923, %v1909, 0.0
    %v2024 = vadd.f32 %v2022, %v2023
    %v2025 = vsel %vm1923, %v1910, 0.0
    %v2026 = vadd.f32 %v2024, %v2025
    %v2027 = vsel %vm1923, %v1911, 0.0
    %v2028 = vadd.f32 %v2026, %v2027
    %v2029 = vsel %vm1923, %v1912, 0.0
    %v2030 = vadd.f32 %v2028, %v2029
    %v2031 = vsel %vm1923, %v1913, 0.0
    %v2032 = vadd.f32 %v2030, %v2031
    %v2033 = vsel %vm1923, %v1914, 0.0
    %v2034 = vadd.f32 %v2032, %v2033
    %v2035 = vsel %vm1923, %v1915, 0.0
    %v2036 = vadd.f32 %v2034, %v2035
    %v2037 = vsel %vm1923, %v1916, 0.0
    %v2038 = vadd.f32 %v2036, %v2037
    %v2039 = vsel %vm1923, %v1917, 0.0
    %v2040 = vadd.f32 %v2038, %v2039
    %v2041 = vsel %vm1923, %v1918, 0.0
    %v2042 = vadd.f32 %v2040, %v2041
    %v2043 = vsel %vm1923, %v1919, 0.0
    %v2044 = vadd.f32 %v2042, %v2043
    %v2045 = vsel %vm1923, %v1920, 0.0
    %v2046 = vadd.f32 %v2044, %v2045
    %v2047 = vsel %vm1923, %v1921, 0.0
    %v2048 = vadd.f32 %v2046, %v2047
    %v2049 = vsel %vm1923, %v1922, 0.0
    %v2050 = vadd.f32 %v2048, %v2049
    %v2051 = vrot.slane %v2050, 4
    %v2052 = vadd.f32 %v2050, %v2051
    %v2053 = vrot.slane %v2052, 2
    %v2054 = vadd.f32 %v2052, %v2053
    %v2055 = vrot.slane %v2054, 1
    %v2056 = vadd.f32 %v2054, %v2055
    %v2057 = vrcp.pop 256.0
    %v2058 = vmul.f32 %v2056, %v2057
    %v2059 = vsel %vm1795, -inf, %v1666
    %v2060 = vsel %vm1796, -inf, %v1667
    %v2061 = vsel %vm1797, -inf, %v1668
    %v2062 = vsel %vm1798, -inf, %v1669
    %v2063 = vsel %vm1799, -inf, %v1670
    %v2064 = vsel %vm1800, -inf, %v1671
    %v2065 = vsel %vm1801, -inf, %v1672
    %v2066 = vsel %vm1802, -inf, %v1673
    %v2067 = vsel %vm1803, -inf, %v1674
    %v2068 = vsel %vm1804, -inf, %v1675
    %v2069 = vsel %vm1805, -inf, %v1676
    %v2070 = vsel %vm1806, -inf, %v1677
    %v2071 = vsel %vm1807, -inf, %v1678
    %v2072 = vsel %vm1808, -inf, %v1679
    %v2073 = vsel %vm1809, -inf, %v1680
    %v2074 = vsel %vm1810, -inf, %v1681
    %v2075 = vsel %vm1811, -inf, %v1682
    %v2076 = vsel %vm1812, -inf, %v1683
    %v2077 = vsel %vm1813, -inf, %v1684
    %v2078 = vsel %vm1814, -inf, %v1685
    %v2079 = vsel %vm1815, -inf, %v1686
    %v2080 = vsel %vm1816, -inf, %v1687
    %v2081 = vsel %vm1817, -inf, %v1688
    %v2082 = vsel %vm1818, -inf, %v1689
    %v2083 = vsel %vm1819, -inf, %v1690
    %v2084 = vsel %vm1820, -inf, %v1691
    %v2085 = vsel %vm1821, -inf, %v1692
    %v2086 = vsel %vm1822, -inf, %v1693
    %v2087 = vsel %vm1823, -inf, %v1694
    %v2088 = vsel %vm1824, -inf, %v1695
    %v2089 = vsel %vm1825, -inf, %v1696
    %v2090 = vsel %vm1826, -inf, %v1697
    %v2091 = vsel %vm1827, -inf, %v1698
    %v2092 = vsel %vm1828, -inf, %v1699
    %v2093 = vsel %vm1829, -inf, %v1700
    %v2094 = vsel %vm1830, -inf, %v1701
    %v2095 = vsel %vm1831, -inf, %v1702
    %v2096 = vsel %vm1832, -inf, %v1703
    %v2097 = vsel %vm1833, -inf, %v1704
    %v2098 = vsel %vm1834, -inf, %v1705
    %v2099 = vsel %vm1835, -inf, %v1706
    %v2100 = vsel %vm1836, -inf, %v1707
    %v2101 = vsel %vm1837, -inf, %v1708
    %v2102 = vsel %vm1838, -inf, %v1709
    %v2103 = vsel %vm1839, -inf, %v1710
    %v2104 = vsel %vm1840, -inf, %v1711
    %v2105 = vsel %vm1841, -inf, %v1712
    %v2106 = vsel %vm1842, -inf, %v1713
    %v2107 = vsel %vm1843, -inf, %v1714
    %v2108 = vsel %vm1844, -inf, %v1715
    %v2109 = vsel %vm1845, -inf, %v1716
    %v2110 = vsel %vm1846, -inf, %v1717
    %v2111 = vsel %vm1847, -inf, %v1718
    %v2112 = vsel %vm1848, -inf, %v1719
    %v2113 = vsel %vm1849, -inf, %v1720
    %v2114 = vsel %vm1850, -inf, %v1721
    %v2115 = vsel %vm1851, -inf, %v1722
    %v2116 = vsel %vm1852, -inf, %v1723
    %v2117 = vsel %vm1853, -inf, %v1724
    %v2118 = vsel %vm1854, -inf, %v1725
    %v2119 = vsel %vm1855, -inf, %v1726
    %v2120 = vsel %vm1856, -inf, %v1727
    %v2121 = vsel %vm1857, -inf, %v1728
    %v2122 = vsel %vm1858, -inf, %v1729
    %v2123 = vsel %vm1923, %v2059, -inf
    %v2124 = vsel %vm1923, %v2060, -inf
    %v2125 = vsel %vm1923, %v2061, -inf
    %v2126 = vsel %vm1923, %v2062, -inf
    %v2127 = vsel %vm1923, %v2063, -inf
    %v2128 = vmax.f32 %v2123, %v2127
    %v2129 = vsel %vm1923, %v2064, -inf
    %v2130 = vmax.f32 %v2124, %v2129
    %v2131 = vsel %vm1923, %v2065, -inf
    %v2132 = vmax.f32 %v2125, %v2131
    %v2133 = vsel %vm1923, %v2066, -inf
    %v2134 = vmax.f32 %v2126, %v2133
    %v2135 = vsel %vm1923, %v2067, -inf
    %v2136 = vmax.f32 %v2128, %v2135
    %v2137 = vsel %vm1923, %v2068, -inf
    %v2138 = vmax.f32 %v2130, %v2137
    %v2139 = vsel %vm1923, %v2069, -inf
    %v2140 = vmax.f32 %v2132, %v2139
    %v2141 = vsel %vm1923, %v2070, -inf
    %v2142 = vmax.f32 %v2134, %v2141
    %v2143 = vsel %vm1923, %v2071, -inf
    %v2144 = vmax.f32 %v2136, %v2143
    %v2145 = vsel %vm1923, %v2072, -inf
    %v2146 = vmax.f32 %v2138, %v2145
    %v2147 = vsel %vm1923, %v2073, -inf
    %v2148 = vmax.f32 %v2140, %v2147
    %v2149 = vsel %vm1923, %v2074, -inf
    %v2150 = vmax.f32 %v2142, %v2149
    %v2151 = vsel %vm1923, %v2075, -inf
    %v2152 = vmax.f32 %v2144, %v2151
    %v2153 = vsel %vm1923, %v2076, -inf
    %v2154 = vmax.f32 %v2146, %v2153
    %v2155 = vsel %vm1923, %v2077, -inf
    %v2156 = vmax.f32 %v2148, %v2155
    %v2157 = vsel %vm1923, %v2078, -inf
    %v2158 = vmax.f32 %v2150, %v2157
    %v2159 = vsel %vm1923, %v2079, -inf
    %v2160 = vmax.f32 %v2152, %v2159
    %v2161 = vsel %vm1923, %v2080, -inf
    %v2162 = vmax.f32 %v2154, %v2161
    %v2163 = vsel %vm1923, %v2081, -inf
    %v2164 = vmax.f32 %v2156, %v2163
    %v2165 = vsel %vm1923, %v2082, -inf
    %v2166 = vmax.f32 %v2158, %v2165
    %v2167 = vsel %vm1923, %v2083, -inf
    %v2168 = vmax.f32 %v2160, %v2167
    %v2169 = vsel %vm1923, %v2084, -inf
    %v2170 = vmax.f32 %v2162, %v2169
    %v2171 = vsel %vm1923, %v2085, -inf
    %v2172 = vmax.f32 %v2164, %v2171
    %v2173 = vsel %vm1923, %v2086, -inf
    %v2174 = vmax.f32 %v2166, %v2173
    %v2175 = vsel %vm1923, %v2087, -inf
    %v2176 = vmax.f32 %v2168, %v2175
    %v2177 = vsel %vm1923, %v2088, -inf
    %v2178 = vmax.f32 %v2170, %v2177
    %v2179 = vsel %vm1923, %v2089, -inf
    %v2180 = vmax.f32 %v2172, %v2179
    %v2181 = vsel %vm1923, %v2090, -inf
    %v2182 = vmax.f32 %v2174, %v2181
    %v2183 = vsel %vm1923, %v2091, -inf
    %v2184 = vmax.f32 %v2176, %v2183
    %v2185 = vsel %vm1923, %v2092, -inf
    %v2186 = vmax.f32 %v2178, %v2185
    %v2187 = vsel %vm1923, %v2093, -inf
    %v2188 = vmax.f32 %v2180, %v2187
    %v2189 = vsel %vm1923, %v2094, -inf
    %v2190 = vmax.f32 %v2182, %v2189
    %v2191 = vsel %vm1923, %v2095, -inf
    %v2192 = vmax.f32 %v2184, %v2191
    %v2193 = vsel %vm1923, %v2096, -inf
    %v2194 = vmax.f32 %v2186, %v2193
    %v2195 = vsel %vm1923, %v2097, -inf
    %v2196 = vmax.f32 %v2188, %v2195
    %v2197 = vsel %vm1923, %v2098, -inf
    %v2198 = vmax.f32 %v2190, %v2197
    %v2199 = vsel %vm1923, %v2099, -inf
    %v2200 = vmax.f32 %v2192, %v2199
    %v2201 = vsel %vm1923, %v2100, -inf
    %v2202 = vmax.f32 %v2194, %v2201
    %v2203 = vsel %vm1923, %v2101, -inf
    %v2204 = vmax.f32 %v2196, %v2203
    %v2205 = vsel %vm1923, %v2102, -inf
    %v2206 = vmax.f32 %v2198, %v2205
    %v2207 = vsel %vm1923, %v2103, -inf
    %v2208 = vmax.f32 %v2200, %v2207
    %v2209 = vsel %vm1923, %v2104, -inf
    %v2210 = vmax.f32 %v2202, %v2209
    %v2211 = vsel %vm1923, %v2105, -inf
    %v2212 = vmax.f32 %v2204, %v2211
    %v2213 = vsel %vm1923, %v2106, -inf
    %v2214 = vmax.f32 %v2206, %v2213
    %v2215 = vsel %vm1923, %v2107, -inf
    %v2216 = vmax.f32 %v2208, %v2215
    %v2217 = vsel %vm1923, %v2108, -inf
    %v2218 = vmax.f32 %v2210, %v2217
    %v2219 = vsel %vm1923, %v2109, -inf
    %v2220 = vmax.f32 %v2212, %v2219
    %v2221 = vsel %vm1923, %v2110, -inf
    %v2222 = vmax.f32 %v2214, %v2221
    %v2223 = vsel %vm1923, %v2111, -inf
    %v2224 = vmax.f32 %v2216, %v2223
    %v2225 = vsel %vm1923, %v2112, -inf
    %v2226 = vmax.f32 %v2218, %v2225
    %v2227 = vsel %vm1923, %v2113, -inf
    %v2228 = vmax.f32 %v2220, %v2227
    %v2229 = vsel %vm1923, %v2114, -inf
    %v2230 = vmax.f32 %v2222, %v2229
    %v2231 = vsel %vm1923, %v2115, -inf
    %v2232 = vmax.f32 %v2224, %v2231
    %v2233 = vsel %vm1923, %v2116, -inf
    %v2234 = vmax.f32 %v2226, %v2233
    %v2235 = vsel %vm1923, %v2117, -inf
    %v2236 = vmax.f32 %v2228, %v2235
    %v2237 = vsel %vm1923, %v2118, -inf
    %v2238 = vmax.f32 %v2230, %v2237
    %v2239 = vsel %vm1923, %v2119, -inf
    %v2240 = vmax.f32 %v2232, %v2239
    %v2241 = vsel %vm1923, %v2120, -inf
    %v2242 = vmax.f32 %v2234, %v2241
    %v2243 = vsel %vm1923, %v2121, -inf
    %v2244 = vmax.f32 %v2236, %v2243
    %v2245 = vsel %vm1923, %v2122, -inf
    %v2246 = vmax.f32 %v2238, %v2245
    %v2247 = vmax.f32 %v2240, %v2242
    %v2248 = vmax.f32 %v2244, %v2246
    %v2249 = vmax.f32 %v2247, %v2248
    %v2250 = vrot.slane %v2249, 4
    %v2251 = vmax.f32 %v2249, %v2250
    %v2252 = vrot.slane %v2251, 2
    %v2253 = vmax.f32 %v2251, %v2252
    %v2254 = vrot.slane %v2253, 1
    %v2255 = vmax.f32 %v2253, %v2254
    %v2256 = vsub.f32 %v2059, %v2255
    %v2257 = vsub.f32 %v2060, %v2255
    %v2258 = vsub.f32 %v2061, %v2255
    %v2259 = vsub.f32 %v2062, %v2255
    %v2260 = vsub.f32 %v2063, %v2255
    %v2261 = vsub.f32 %v2064, %v2255
    %v2262 = vsub.f32 %v2065, %v2255
    %v2263 = vsub.f32 %v2066, %v2255
    %v2264 = vsub.f32 %v2067, %v2255
    %v2265 = vsub.f32 %v2068, %v2255
    %v2266 = vsub.f32 %v2069, %v2255
    %v2267 = vsub.f32 %v2070, %v2255
    %v2268 = vsub.f32 %v2071, %v2255
    %v2269 = vsub.f32 %v2072, %v2255
    %v2270 = vsub.f32 %v2073, %v2255
    %v2271 = vsub.f32 %v2074, %v2255
    %v2272 = vsub.f32 %v2075, %v2255
    %v2273 = vsub.f32 %v2076, %v2255
    %v2274 = vsub.f32 %v2077, %v2255
    %v2275 = vsub.f32 %v2078, %v2255
    %v2276 = vsub.f32 %v2079, %v2255
    %v2277 = vsub.f32 %v2080, %v2255
    %v2278 = vsub.f32 %v2081, %v2255
    %v2279 = vsub.f32 %v2082, %v2255
    %v2280 = vsub.f32 %v2083, %v2255
    %v2281 = vsub.f32 %v2084, %v2255
    %v2282 = vsub.f32 %v2085, %v2255
    %v2283 = vsub.f32 %v2086, %v2255
    %v2284 = vsub.f32 %v2087, %v2255
    %v2285 = vsub.f32 %v2088, %v2255
    %v2286 = vsub.f32 %v2089, %v2255
    %v2287 = vsub.f32 %v2090, %v2255
    %v2288 = vsub.f32 %v2091, %v2255
    %v2289 = vsub.f32 %v2092, %v2255
    %v2290 = vsub.f32 %v2093, %v2255
    %v2291 = vsub.f32 %v2094, %v2255
    %v2292 = vsub.f32 %v2095, %v2255
    %v2293 = vsub.f32 %v2096, %v2255
    %v2294 = vsub.f32 %v2097, %v2255
    %v2295 = vsub.f32 %v2098, %v2255
    %v2296 = vsub.f32 %v2099, %v2255
    %v2297 = vsub.f32 %v2100, %v2255
    %v2298 = vsub.f32 %v2101, %v2255
    %v2299 = vsub.f32 %v2102, %v2255
    %v2300 = vsub.f32 %v2103, %v2255
    %v2301 = vsub.f32 %v2104, %v2255
    %v2302 = vsub.f32 %v2105, %v2255
    %v2303 = vsub.f32 %v2106, %v2255
    %v2304 = vsub.f32 %v2107, %v2255
    %v2305 = vsub.f32 %v2108, %v2255
    %v2306 = vsub.f32 %v2109, %v2255
    %v2307 = vsub.f32 %v2110, %v2255
    %v2308 = vsub.f32 %v2111, %v2255
    %v2309 = vsub.f32 %v2112, %v2255
    %v2310 = vsub.f32 %v2113, %v2255
    %v2311 = vsub.f32 %v2114, %v2255
    %v2312 = vsub.f32 %v2115, %v2255
    %v2313 = vsub.f32 %v2116, %v2255
    %v2314 = vsub.f32 %v2117, %v2255
    %v2315 = vsub.f32 %v2118, %v2255
    %v2316 = vsub.f32 %v2119, %v2255
    %v2317 = vsub.f32 %v2120, %v2255
    %v2318 = vsub.f32 %v2121, %v2255
    %v2319 = vsub.f32 %v2122, %v2255
    %v2320 = vmul.f32 %v2256, 1.442695
    %v2321 = vpow.pop %v2320
    %v2322 = vmul.f32 %v2257, 1.442695
    %v2323 = vpow.pop %v2322
    %v2324 = vmul.f32 %v2258, 1.442695
    %v2325 = vpow.pop %v2324
    %v2326 = vmul.f32 %v2259, 1.442695
    %v2327 = vpow.pop %v2326
    %v2328 = vmul.f32 %v2260, 1.442695
    %v2329 = vpow.pop %v2328
    %v2330 = vmul.f32 %v2261, 1.442695
    %v2331 = vpow.pop %v2330
    %v2332 = vmul.f32 %v2262, 1.442695
    %v2333 = vpow.pop %v2332
    %v2334 = vmul.f32 %v2263, 1.442695
    %v2335 = vpow.pop %v2334
    %v2336 = vmul.f32 %v2264, 1.442695
    %v2337 = vpow.pop %v2336
    %v2338 = vmul.f32 %v2265, 1.442695
    %v2339 = vpow.pop %v2338
    %v2340 = vmul.f32 %v2266, 1.442695
    %v2341 = vpow.pop %v2340
    %v2342 = vmul.f32 %v2267, 1.442695
    %v2343 = vpow.pop %v2342
    %v2344 = vmul.f32 %v2268, 1.442695
    %v2345 = vpow.pop %v2344
    %v2346 = vmul.f32 %v2269, 1.442695
    %v2347 = vpow.pop %v2346
    %v2348 = vmul.f32 %v2270, 1.442695
    %v2349 = vpow.pop %v2348
    %v2350 = vmul.f32 %v2271, 1.442695
    %v2351 = vpow.pop %v2350
    %v2352 = vmul.f32 %v2272, 1.442695
    %v2353 = vpow.pop %v2352
    %v2354 = vmul.f32 %v2273, 1.442695
    %v2355 = vpow.pop %v2354
    %v2356 = vmul.f32 %v2274, 1.442695
    %v2357 = vpow.pop %v2356
    %v2358 = vmul.f32 %v2275, 1.442695
    %v2359 = vpow.pop %v2358
    %v2360 = vmul.f32 %v2276, 1.442695
    %v2361 = vpow.pop %v2360
    %v2362 = vmul.f32 %v2277, 1.442695
    %v2363 = vpow.pop %v2362
    %v2364 = vmul.f32 %v2278, 1.442695
    %v2365 = vpow.pop %v2364
    %v2366 = vmul.f32 %v2279, 1.442695
    %v2367 = vpow.pop %v2366
    %v2368 = vmul.f32 %v2280, 1.442695
    %v2369 = vpow.pop %v2368
    %v2370 = vmul.f32 %v2281, 1.442695
    %v2371 = vpow.pop %v2370
    %v2372 = vmul.f32 %v2282, 1.442695
    %v2373 = vpow.pop %v2372
    %v2374 = vmul.f32 %v2283, 1.442695
    %v2375 = vpow.pop %v2374
    %v2376 = vmul.f32 %v2284, 1.442695
    %v2377 = vpow.pop %v2376
    %v2378 = vmul.f32 %v2285, 1.442695
    %v2379 = vpow.pop %v2378
    %v2380 = vmul.f32 %v2286, 1.442695
    %v2381 = vpow.pop %v2380
    %v2382 = vmul.f32 %v2287, 1.442695
    %v2383 = vpow.pop %v2382
    %v2384 = vmul.f32 %v2288, 1.442695
    %v2385 = vpow.pop %v2384
    %v2386 = vmul.f32 %v2289, 1.442695
    %v2387 = vpow.pop %v2386
    %v2388 = vmul.f32 %v2290, 1.442695
    %v2389 = vpow.pop %v2388
    %v2390 = vmul.f32 %v2291, 1.442695
    %v2391 = vpow.pop %v2390
    %v2392 = vmul.f32 %v2292, 1.442695
    %v2393 = vpow.pop %v2392
    %v2394 = vmul.f32 %v2293, 1.442695
    %v2395 = vpow.pop %v2394
    %v2396 = vmul.f32 %v2294, 1.442695
    %v2397 = vpow.pop %v2396
    %v2398 = vmul.f32 %v2295, 1.442695
    %v2399 = vpow.pop %v2398
    %v2400 = vmul.f32 %v2296, 1.442695
    %v2401 = vpow.pop %v2400
    %v2402 = vmul.f32 %v2297, 1.442695
    %v2403 = vpow.pop %v2402
    %v2404 = vmul.f32 %v2298, 1.442695
    %v2405 = vpow.pop %v2404
    %v2406 = vmul.f32 %v2299, 1.442695
    %v2407 = vpow.pop %v2406
    %v2408 = vmul.f32 %v2300, 1.442695
    %v2409 = vpow.pop %v2408
    %v2410 = vmul.f32 %v2301, 1.442695
    %v2411 = vpow.pop %v2410
    %v2412 = vmul.f32 %v2302, 1.442695
    %v2413 = vpow.pop %v2412
    %v2414 = vmul.f32 %v2303, 1.442695
    %v2415 = vpow.pop %v2414
    %v2416 = vmul.f32 %v2304, 1.442695
    %v2417 = vpow.pop %v2416
    %v2418 = vmul.f32 %v2305, 1.442695
    %v2419 = vpow.pop %v2418
    %v2420 = vmul.f32 %v2306, 1.442695
    %v2421 = vpow.pop %v2420
    %v2422 = vmul.f32 %v2307, 1.442695
    %v2423 = vpow.pop %v2422
    %v2424 = vmul.f32 %v2308, 1.442695
    %v2425 = vpow.pop %v2424
    %v2426 = vmul.f32 %v2309, 1.442695
    %v2427 = vpow.pop %v2426
    %v2428 = vmul.f32 %v2310, 1.442695
    %v2429 = vpow.pop %v2428
    %v2430 = vmul.f32 %v2311, 1.442695
    %v2431 = vpow.pop %v2430
    %v2432 = vmul.f32 %v2312, 1.442695
    %v2433 = vpow.pop %v2432
    %v2434 = vmul.f32 %v2313, 1.442695
    %v2435 = vpow.pop %v2434
    %v2436 = vmul.f32 %v2314, 1.442695
    %v2437 = vpow.pop %v2436
    %v2438 = vmul.f32 %v2315, 1.442695
    %v2439 = vpow.pop %v2438
    %v2440 = vmul.f32 %v2316, 1.442695
    %v2441 = vpow.pop %v2440
    %v2442 = vmul.f32 %v2317, 1.442695
    %v2443 = vpow.pop %v2442
    %v2444 = vmul.f32 %v2318, 1.442695
    %v2445 = vpow.pop %v2444
    %v2446 = vmul.f32 %v2319, 1.442695
    %v2447 = vpow.pop %v2446
    %v2448 = vsel %vm1923, %v2321, 0.0
    %v2449 = vsel %vm1923, %v2323, 0.0
    %v2450 = vadd.f32 %v2448, %v2449
    %v2451 = vsel %vm1923, %v2325, 0.0
    %v2452 = vadd.f32 %v2450, %v2451
    %v2453 = vsel %vm1923, %v2327, 0.0
    %v2454 = vadd.f32 %v2452, %v2453
    %v2455 = vsel %vm1923, %v2329, 0.0
    %v2456 = vadd.f32 %v2454, %v2455
    %v2457 = vsel %vm1923, %v2331, 0.0
    %v2458 = vadd.f32 %v2456, %v2457
    %v2459 = vsel %vm1923, %v2333, 0.0
    %v2460 = vadd.f32 %v2458, %v2459
    %v2461 = vsel %vm1923, %v2335, 0.0
    %v2462 = vadd.f32 %v2460, %v2461
    %v2463 = vsel %vm1923, %v2337, 0.0
    %v2464 = vadd.f32 %v2462, %v2463
    %v2465 = vsel %vm1923, %v2339, 0.0
    %v2466 = vadd.f32 %v2464, %v2465
    %v2467 = vsel %vm1923, %v2341, 0.0
    %v2468 = vadd.f32 %v2466, %v2467
    %v2469 = vsel %vm1923, %v2343, 0.0
    %v2470 = vadd.f32 %v2468, %v2469
    %v2471 = vsel %vm1923, %v2345, 0.0
    %v2472 = vadd.f32 %v2470, %v2471
    %v2473 = vsel %vm1923, %v2347, 0.0
    %v2474 = vadd.f32 %v2472, %v2473
    %v2475 = vsel %vm1923, %v2349, 0.0
    %v2476 = vadd.f32 %v2474, %v2475
    %v2477 = vsel %vm1923, %v2351, 0.0
    %v2478 = vadd.f32 %v2476, %v2477
    %v2479 = vsel %vm1923, %v2353, 0.0
    %v2480 = vadd.f32 %v2478, %v2479
    %v2481 = vsel %vm1923, %v2355, 0.0
    %v2482 = vadd.f32 %v2480, %v2481
    %v2483 = vsel %vm1923, %v2357, 0.0
    %v2484 = vadd.f32 %v2482, %v2483
    %v2485 = vsel %vm1923, %v2359, 0.0
    %v2486 = vadd.f32 %v2484, %v2485
    %v2487 = vsel %vm1923, %v2361, 0.0
    %v2488 = vadd.f32 %v2486, %v2487
    %v2489 = vsel %vm1923, %v2363, 0.0
    %v2490 = vadd.f32 %v2488, %v2489
    %v2491 = vsel %vm1923, %v2365, 0.0
    %v2492 = vadd.f32 %v2490, %v2491
    %v2493 = vsel %vm1923, %v2367, 0.0
    %v2494 = vadd.f32 %v2492, %v2493
    %v2495 = vsel %vm1923, %v2369, 0.0
    %v2496 = vadd.f32 %v2494, %v2495
    %v2497 = vsel %vm1923, %v2371, 0.0
    %v2498 = vadd.f32 %v2496, %v2497
    %v2499 = vsel %vm1923, %v2373, 0.0
    %v2500 = vadd.f32 %v2498, %v2499
    %v2501 = vsel %vm1923, %v2375, 0.0
    %v2502 = vadd.f32 %v2500, %v2501
    %v2503 = vsel %vm1923, %v2377, 0.0
    %v2504 = vadd.f32 %v2502, %v2503
    %v2505 = vsel %vm1923, %v2379, 0.0
    %v2506 = vadd.f32 %v2504, %v2505
    %v2507 = vsel %vm1923, %v2381, 0.0
    %v2508 = vadd.f32 %v2506, %v2507
    %v2509 = vsel %vm1923, %v2383, 0.0
    %v2510 = vadd.f32 %v2508, %v2509
    %v2511 = vsel %vm1923, %v2385, 0.0
    %v2512 = vadd.f32 %v2510, %v2511
    %v2513 = vsel %vm1923, %v2387, 0.0
    %v2514 = vadd.f32 %v2512, %v2513
    %v2515 = vsel %vm1923, %v2389, 0.0
    %v2516 = vadd.f32 %v2514, %v2515
    %v2517 = vsel %vm1923, %v2391, 0.0
    %v2518 = vadd.f32 %v2516, %v2517
    %v2519 = vsel %vm1923, %v2393, 0.0
    %v2520 = vadd.f32 %v2518, %v2519
    %v2521 = vsel %vm1923, %v2395, 0.0
    %v2522 = vadd.f32 %v2520, %v2521
    %v2523 = vsel %vm1923, %v2397, 0.0
    %v2524 = vadd.f32 %v2522, %v2523
    %v2525 = vsel %vm1923, %v2399, 0.0
    %v2526 = vadd.f32 %v2524, %v2525
    %v2527 = vsel %vm1923, %v2401, 0.0
    %v2528 = vadd.f32 %v2526, %v2527
    %v2529 = vsel %vm1923, %v2403, 0.0
    %v2530 = vadd.f32 %v2528, %v2529
    %v2531 = vsel %vm1923, %v2405, 0.0
    %v2532 = vadd.f32 %v2530, %v2531
    %v2533 = vsel %vm1923, %v2407, 0.0
    %v2534 = vadd.f32 %v2532, %v2533
    %v2535 = vsel %vm1923, %v2409, 0.0
    %v2536 = vadd.f32 %v2534, %v2535
    %v2537 = vsel %vm1923, %v2411, 0.0
    %v2538 = vadd.f32 %v2536, %v2537
    %v2539 = vsel %vm1923, %v2413, 0.0
    %v2540 = vadd.f32 %v2538, %v2539
    %v2541 = vsel %vm1923, %v2415, 0.0
    %v2542 = vadd.f32 %v2540, %v2541
    %v2543 = vsel %vm1923, %v2417, 0.0
    %v2544 = vadd.f32 %v2542, %v2543
    %v2545 = vsel %vm1923, %v2419, 0.0
    %v2546 = vadd.f32 %v2544, %v2545
    %v2547 = vsel %vm1923, %v2421, 0.0
    %v2548 = vadd.f32 %v2546, %v2547
    %v2549 = vsel %vm1923, %v2423, 0.0
    %v2550 = vadd.f32 %v2548, %v2549
    %v2551 = vsel %vm1923, %v2425, 0.0
    %v2552 = vadd.f32 %v2550, %v2551
    %v2553 = vsel %vm1923, %v2427, 0.0
    %v2554 = vadd.f32 %v2552, %v2553
    %v2555 = vsel %vm1923, %v2429, 0.0
    %v2556 = vadd.f32 %v2554, %v2555
    %v2557 = vsel %vm1923, %v2431, 0.0
    %v2558 = vadd.f32 %v2556, %v2557
    %v2559 = vsel %vm1923, %v2433, 0.0
    %v2560 = vadd.f32 %v2558, %v2559
    %v2561 = vsel %vm1923, %v2435, 0.0
    %v2562 = vadd.f32 %v2560, %v2561
    %v2563 = vsel %vm1923, %v2437, 0.0
    %v2564 = vadd.f32 %v2562, %v2563
    %v2565 = vsel %vm1923, %v2439, 0.0
    %v2566 = vadd.f32 %v2564, %v2565
    %v2567 = vsel %vm1923, %v2441, 0.0
    %v2568 = vadd.f32 %v2566, %v2567
    %v2569 = vsel %vm1923, %v2443, 0.0
    %v2570 = vadd.f32 %v2568, %v2569
    %v2571 = vsel %vm1923, %v2445, 0.0
    %v2572 = vadd.f32 %v2570, %v2571
    %v2573 = vsel %vm1923, %v2447, 0.0
    %v2574 = vadd.f32 %v2572, %v2573
    %v2575 = vrot.slane %v2574, 4
    %v2576 = vadd.f32 %v2574, %v2575
    %v2577 = vrot.slane %v2576, 2
    %v2578 = vadd.f32 %v2576, %v2577
    %v2579 = vrot.slane %v2578, 1
    %v2580 = vadd.f32 %v2578, %v2579
    %v2581 = vlog2.pop %v2580
    %v2582 = vmul.f32 %v2581, 0.6931472
    %v2583 = vadd.f32 %v2255, %v2582
    %v2584 = vsub.f32 %v2583, 5.5451775
    %v2585 = vsub.f32 %v2058, %v2584
    %v2586 = vsub.f32 0.0, %v2585
    %vm2587 = vcmask 0
    %2588 = vst.msk [vmem:[#allocation3] sm:$0x1] %vm2587, %v2586
    // Predicated region
    $region30: #{tpu_custom_call.1} parent=1 // pred_check
      _
    $region31: #{tpu_custom_call.1} parent=1 // pred_check_branch
      %2590 = sbr.rel (0) target = $region33
    $region32: #{tpu_custom_call.1} parent=1 // pred_region
      %s2592 = ssub.s32 16, 16
      %2593 = vsyncadd [#allocation4], %s2592
      %s2595 = sshll.u32 [#allocation3], 4
      %s2596 = int_to_ptr.vmem [resolvable:$true] %s2595
      %2598 = dma.vmem_to_hbm [thread:$0]  %s2596, 16, %s7, [#allocation4]
    $region33: #{tpu_custom_call.1} parent=1 // pred_fallthru
      _
    // Predicated region
    $region34: #{tpu_custom_call.1} parent=1 // pred_check
      _
    $region35: #{tpu_custom_call.1} parent=1 // pred_check_branch
      %2600 = sbr.rel (0) target = $region37
    $region36: #{tpu_custom_call.1} parent=1 // pred_region
      %2601 = dma.done [#allocation4], 16
    $region37: #{tpu_custom_call.1} parent=1 // pred_fallthru
      _
    %2602 = vsyncpa [#allocation4], 1

</llo_original>
